<compile_context>
chip_gen: v7x
topology: tpu7x:2x2x1
jax: 0.10.0
libtpu: 0.0.40
codegen_flags: <defaults>
</compile_context>

<pallas_src>
import jax
import jax.numpy as jnp
from jax import lax
from jax.experimental import pallas as pl
from jax.experimental.pallas import tpu as pltpu


# ------------------------------ fused kernel ---------------------------------
def fused_lstm_kernel(x_ref, wih0_ref, whh0_ref, b0_ref,
                      w1cat_ref, b1_ref, wout_ref, bout_ref,
                      out_ref, gx_scr):
    """x_ref: (T*Bp, D) time-major; out_ref: (Bp, O); gx_scr: (T*Bp, 4H) VMEM scratch.

    Gate column order inside the kernel is [i, f, o, g] (reordered at weight-prep time).
    """
    Bp = out_ref.shape[0]
    H = whh0_ref.shape[0]
    T = x_ref.shape[0] // Bp

    # ---- hoisted layer-0 input projection (one bulk MXU pass over all timesteps),
    #      bias folded in; kept in VMEM and read back one step at a time.
    gx_scr[...] = (jnp.dot(x_ref[...], wih0_ref[...],
                           preferred_element_type=jnp.float32) + b0_ref[...])

    # ---- weight residency: load recurrent weights once, outside the time loop.
    whh0 = whh0_ref[...]                      # (H, 4H)
    w1cat = w1cat_ref[...]                    # (2H, 4H) = vstack(W_ih1, W_hh1)
    b1 = jnp.broadcast_to(b1_ref[...], (Bp, 4 * H))   # hoisted broadcast

    def gates_to_hc(gates, c):
        # [i, f, o] contiguous sigmoid block, tanh gate last.
        sfo = jax.nn.sigmoid(gates[:, :3 * H])
        g = jnp.tanh(gates[:, 3 * H:])
        c_new = sfo[:, H:2 * H] * c + sfo[:, :H] * g
        h_new = sfo[:, 2 * H:3 * H] * jnp.tanh(c_new)
        return h_new, c_new

    zero = jnp.zeros((Bp, H), jnp.float32)

    # ---- layer-0 step 0: h_prev = c_prev = 0, so gates are exactly gx0[0].
    h0, c0 = gates_to_hc(gx_scr[pl.ds(0, Bp), :], zero)
    h1, c1 = zero, zero                       # layer-1 state at "step -1"

    # ---- wavefront loop: iteration t runs layer-0 step t and layer-1 step t-1.
    def body(t, carry):
        h0, c0, h1, c1 = carry
        lo = pl.multiple_of(t * Bp, Bp)       # Bp is a multiple of 8 (sublane aligned)
        gx_t = gx_scr[pl.ds(lo, Bp), :]
        # layer-0 step t (serial critical path: only h0 @ W_hh0 + elementwise gates)
        g0 = gx_t + jnp.dot(h0, whh0, preferred_element_type=jnp.float32)
        # layer-1 step t-1 (independent of layer-0 step t; contraction = 2H = 128)
        g1 = jnp.dot(jnp.concatenate([h0, h1], axis=-1), w1cat,
                     preferred_element_type=jnp.float32) + b1
        h0n, c0n = gates_to_hc(g0, c0)
        h1n, c1n = gates_to_hc(g1, c1)
        return h0n, c0n, h1n, c1n

    h0, c0, h1, c1 = lax.fori_loop(1, T, body, (h0, c0, h1, c1), unroll=True)

    # ---- drain: layer-1 step T-1 (uses h0_{T-1}, h1_{T-2}).
    g1 = jnp.dot(jnp.concatenate([h0, h1], axis=-1), w1cat,
                 preferred_element_type=jnp.float32) + b1
    h1, _ = gates_to_hc(g1, c1)

    # ---- final Linear on the last hidden state, fused into the same kernel.
    out_ref[...] = (jnp.dot(h1, wout_ref[...],
                            preferred_element_type=jnp.float32) + bout_ref[...])


# --------------------------------- wrapper ------------------------------------
def rnn_forward(params, x):
    """x: (B, T, input_size) -> (B, output_size); matches RNN.forward."""
    x = x.astype(jnp.float32)
    B, T, D = x.shape
    H = params["w_hh_0"].shape[0]
    O = params["w_out"].shape[1]

    # Reorder gate columns from PyTorch [i, f, g, o] to kernel [i, f, o, g]
    # (sigmoid gates contiguous, tanh gate last) — done once at weight-prep time.
    def reorder(w):
        return jnp.concatenate([w[..., :2 * H], w[..., 3 * H:], w[..., 2 * H:3 * H]],
                               axis=-1)

    wih0 = reorder(params["w_ih_0"])                     # (D, 4H)
    whh0 = reorder(params["w_hh_0"])                     # (H, 4H)
    b0 = reorder(params["b_0"])                          # (1, 4H)
    w1cat = jnp.concatenate([reorder(params["w_ih_1"]),  # (2H, 4H)
                             reorder(params["w_hh_1"])], axis=0)
    b1 = reorder(params["b_1"])                          # (1, 4H)

    Bp = ((B + 7) // 8) * 8                              # pad batch to sublane multiple
    xt = jnp.transpose(x, (1, 0, 2))                     # (T, B, D) time-major
    xt = jnp.pad(xt, ((0, 0), (0, Bp - B), (0, 0)))      # zero rows: independent, sliced off
    x2d = xt.reshape(T * Bp, D)

    vmem = pl.BlockSpec(memory_space=pltpu.MemorySpace.VMEM)
    out = pl.pallas_call(
        fused_lstm_kernel,
        out_shape=jax.ShapeDtypeStruct((Bp, O), jnp.float32),
        in_specs=[vmem] * 8,
        out_specs=vmem,
        scratch_shapes=[pltpu.VMEM((T * Bp, 4 * H), jnp.float32)],  # gx0 slab
        compiler_params=pltpu.CompilerParams(vmem_limit_bytes=32 * 1024 * 1024),
    )(x2d, wih0, whh0, b0, w1cat, b1, params["w_out"], params["b_out"])
    return out[:B]


# --------------------------------- params -------------------------------------
def init_params(key, input_size, hidden_size=64, output_size=1, num_layers=2):
    params = {}
    k = 1.0 / jnp.sqrt(hidden_size)
    for layer in range(num_layers):
        d_in = input_size if layer == 0 else hidden_size
        key, k1, k2, k3, k4 = jax.random.split(key, 5)
        # stored pre-transposed: (D_in, 4H), (H, 4H); PyTorch stores (4H, D).
        # Gate order here is PyTorch's [i, f, g, o]; the wrapper permutes for the kernel.
        params[f"w_ih_{layer}"] = jax.random.uniform(
            k1, (d_in, 4 * hidden_size), jnp.float32, -k, k)
        params[f"w_hh_{layer}"] = jax.random.uniform(
            k2, (hidden_size, 4 * hidden_size), jnp.float32, -k, k)
        b_ih = jax.random.uniform(k3, (4 * hidden_size,), jnp.float32, -k, k)
        b_hh = jax.random.uniform(k4, (4 * hidden_size,), jnp.float32, -k, k)
        params[f"b_{layer}"] = (b_ih + b_hh).reshape(1, 4 * hidden_size)
    key, k5, k6 = jax.random.split(key, 3)
    ko = 1.0 / jnp.sqrt(hidden_size)
    params["w_out"] = jax.random.uniform(
        k5, (hidden_size, output_size), jnp.float32, -ko, ko)
    params["b_out"] = jax.random.uniform(
        k6, (1, output_size), jnp.float32, -ko, ko)
    return params


# ----------------------------- pure-JAX reference -----------------------------
def rnn_reference(params, x, num_layers=2):
    x = x.astype(jnp.float32)
    seq = jnp.transpose(x, (1, 0, 2))
    for layer in range(num_layers):
        w_ih = params[f"w_ih_{layer}"]
        w_hh = params[f"w_hh_{layer}"]
        b = params[f"b_{layer}"]
        H = w_hh.shape[0]
        B = seq.shape[1]

        def step(carry, x_t):
            h, c = carry
            gates = x_t @ w_ih + h @ w_hh + b
            i = jax.nn.sigmoid(gates[:, 0 * H:1 * H])
            f = jax.nn.sigmoid(gates[:, 1 * H:2 * H])
            g = jnp.tanh(gates[:, 2 * H:3 * H])
            o = jax.nn.sigmoid(gates[:, 3 * H:4 * H])
            c = f * c + i * g
            h = o * jnp.tanh(c)
            return (h, c), h

        init = (jnp.zeros((B, H), jnp.float32), jnp.zeros((B, H), jnp.float32))
        _, seq = jax.lax.scan(step, init, seq)
    return seq[-1] @ params["w_out"] + params["b_out"]


if __name__ == "__main__":
    B, T, INPUT_SIZE, HIDDEN, OUT = 2, 8, 16, 64, 1

    key = jax.random.PRNGKey(0)
    key, xkey = jax.random.split(key)
    x = jax.random.normal(xkey, (B, T, INPUT_SIZE), jnp.float32)

    params = init_params(key, INPUT_SIZE, HIDDEN, OUT, num_layers=2)

    out = rnn_forward(params, x)
    out = jax.block_until_ready(out)

    ref = rnn_reference(params, x)
    assert out.shape == (B, OUT), out.shape
    assert jnp.allclose(out, ref, atol=2e-3, rtol=2e-3), (out, ref)

    print("KERNEL_OK")
</pallas_src>

<mosaic_0001>
module attributes {stable_mosaic.version = 11 : i64} {
  func.func @fused_lstm_kernel(%arg0: memref<64x16xf32, #tpu.memory_space<vmem>>, %arg1: memref<16x256xf32, #tpu.memory_space<vmem>>, %arg2: memref<64x256xf32, #tpu.memory_space<vmem>>, %arg3: memref<1x256xf32, #tpu.memory_space<vmem>>, %arg4: memref<128x256xf32, #tpu.memory_space<vmem>>, %arg5: memref<1x256xf32, #tpu.memory_space<vmem>>, %arg6: memref<64x1xf32, #tpu.memory_space<vmem>>, %arg7: memref<1x1xf32, #tpu.memory_space<vmem>>, %arg8: memref<8x1xf32, #tpu.memory_space<vmem>>, %arg9: memref<64x256xf32, #tpu.memory_space<vmem>>) attributes {dimension_semantics = [], scalar_prefetch = 0 : i64, scratch_operands = 1 : i64, tpu.core_type = #tpu.core_type<tc>} {
    %c0 = arith.constant 0 : index
    %c0_0 = arith.constant 0 : index
    %0 = vector.load %arg0[%c0, %c0_0] : memref<64x16xf32, #tpu.memory_space<vmem>>, vector<64x16xf32>
    %c0_1 = arith.constant 0 : index
    %c0_2 = arith.constant 0 : index
    %1 = vector.load %arg1[%c0_1, %c0_2] : memref<16x256xf32, #tpu.memory_space<vmem>>, vector<16x256xf32>
    %cst = arith.constant dense<0.000000e+00> : vector<64x256xf32>
    %2 = tpu.matmul %0, %1, %cst {dimension_numbers = #tpu.dot_dimension_numbers<[1], [0], [0], [1], [0, 0, 1, 1], [], []>} : vector<64x16xf32>, vector<16x256xf32>, vector<64x256xf32> -> vector<64x256xf32>
    %c0_3 = arith.constant 0 : index
    %c0_4 = arith.constant 0 : index
    %3 = vector.load %arg3[%c0_3, %c0_4] : memref<1x256xf32, #tpu.memory_space<vmem>>, vector<1x256xf32>
    %4 = vector.broadcast %3 : vector<1x256xf32> to vector<64x256xf32>
    %5 = arith.addf %2, %4 : vector<64x256xf32>
    %c0_5 = arith.constant 0 : index
    %c0_6 = arith.constant 0 : index
    %6 = vector.load %arg9[%c0_5, %c0_6] : memref<64x256xf32, #tpu.memory_space<vmem>>, vector<64x256xf32>
    tpu.vector_store %arg9[%c0_5, %c0_6], %5 {strides = array<i32>} : memref<64x256xf32, #tpu.memory_space<vmem>>, vector<64x256xf32>,
    %c0_7 = arith.constant 0 : index
    %c0_8 = arith.constant 0 : index
    %7 = vector.load %arg2[%c0_7, %c0_8] : memref<64x256xf32, #tpu.memory_space<vmem>>, vector<64x256xf32>
    %c0_9 = arith.constant 0 : index
    %c0_10 = arith.constant 0 : index
    %8 = vector.load %arg4[%c0_9, %c0_10] : memref<128x256xf32, #tpu.memory_space<vmem>>, vector<128x256xf32>
    %c0_11 = arith.constant 0 : index
    %c0_12 = arith.constant 0 : index
    %9 = vector.load %arg5[%c0_11, %c0_12] : memref<1x256xf32, #tpu.memory_space<vmem>>, vector<1x256xf32>
    %10 = vector.shape_cast %9 : vector<1x256xf32> to vector<1x256xf32>
    %11 = vector.broadcast %10 : vector<1x256xf32> to vector<8x256xf32>
    %cst_13 = arith.constant 0.000000e+00 : f32
    %12 = vector.broadcast %cst_13 : f32 to vector<8x64xf32>
    %c0_14 = arith.constant 0 : index
    %c0_15 = arith.constant 0 : index
    %13 = vector.load %arg9[%c0_14, %c0_15] : memref<64x256xf32, #tpu.memory_space<vmem>>, vector<8x256xf32>
    %14 = vector.extract_strided_slice %13 {offsets = [0, 0], sizes = [8, 192], strides = [1, 1]} : vector<8x256xf32> to vector<8x192xf32>
    %15 = arith.negf %14 : vector<8x192xf32>
    %16 = math.exp %15 : vector<8x192xf32>
    %cst_16 = arith.constant 1.000000e+00 : f32
    %17 = vector.broadcast %cst_16 : f32 to vector<8x192xf32>
    %18 = arith.addf %17, %16 : vector<8x192xf32>
    %19 = arith.divf %17, %18 : vector<8x192xf32>
    %20 = vector.extract_strided_slice %13 {offsets = [0, 192], sizes = [8, 64], strides = [1, 1]} : vector<8x256xf32> to vector<8x64xf32>
    %21 = math.tanh %20 : vector<8x64xf32>
    %22 = vector.extract_strided_slice %19 {offsets = [0, 64], sizes = [8, 64], strides = [1, 1]} : vector<8x192xf32> to vector<8x64xf32>
    %23 = arith.mulf %22, %12 : vector<8x64xf32>
    %24 = vector.extract_strided_slice %19 {offsets = [0, 0], sizes = [8, 64], strides = [1, 1]} : vector<8x192xf32> to vector<8x64xf32>
    %25 = arith.mulf %24, %21 : vector<8x64xf32>
    %26 = arith.addf %23, %25 : vector<8x64xf32>
    %27 = vector.extract_strided_slice %19 {offsets = [0, 128], sizes = [8, 64], strides = [1, 1]} : vector<8x192xf32> to vector<8x64xf32>
    %28 = math.tanh %26 : vector<8x64xf32>
    %29 = arith.mulf %27, %28 : vector<8x64xf32>
    %c1_i32 = arith.constant 1 : i32
    %c8_i32 = arith.constant 8 : i32
    %30 = arith.muli %c1_i32, %c8_i32 : i32
    %31 = tpu.assume_multiple %30, 8 : i32
    %32 = arith.index_cast %31 : i32 to index
    %c0_17 = arith.constant 0 : index
    %33 = vector.load %arg9[%32, %c0_17] : memref<64x256xf32, #tpu.memory_space<vmem>>, vector<8x256xf32>
    %cst_18 = arith.constant dense<0.000000e+00> : vector<8x256xf32>
    %34 = tpu.matmul %29, %7, %cst_18 {dimension_numbers = #tpu.dot_dimension_numbers<[1], [0], [0], [1], [0, 0, 1, 1], [], []>} : vector<8x64xf32>, vector<64x256xf32>, vector<8x256xf32> -> vector<8x256xf32>
    %35 = arith.addf %33, %34 : vector<8x256xf32>
    %36 = tpu.concatenate %29, %12 in 1 : vector<8x64xf32>, vector<8x64xf32> -> vector<8x128xf32>
    %cst_19 = arith.constant dense<0.000000e+00> : vector<8x256xf32>
    %37 = tpu.matmul %36, %8, %cst_19 {dimension_numbers = #tpu.dot_dimension_numbers<[1], [0], [0], [1], [0, 0, 1, 1], [], []>} : vector<8x128xf32>, vector<128x256xf32>, vector<8x256xf32> -> vector<8x256xf32>
    %38 = arith.addf %37, %11 : vector<8x256xf32>
    %39 = vector.extract_strided_slice %35 {offsets = [0, 0], sizes = [8, 192], strides = [1, 1]} : vector<8x256xf32> to vector<8x192xf32>
    %40 = arith.negf %39 : vector<8x192xf32>
    %41 = math.exp %40 : vector<8x192xf32>
    %cst_20 = arith.constant 1.000000e+00 : f32
    %42 = vector.broadcast %cst_20 : f32 to vector<8x192xf32>
    %43 = arith.addf %42, %41 : vector<8x192xf32>
    %44 = arith.divf %42, %43 : vector<8x192xf32>
    %45 = vector.extract_strided_slice %35 {offsets = [0, 192], sizes = [8, 64], strides = [1, 1]} : vector<8x256xf32> to vector<8x64xf32>
    %46 = math.tanh %45 : vector<8x64xf32>
    %47 = vector.extract_strided_slice %44 {offsets = [0, 64], sizes = [8, 64], strides = [1, 1]} : vector<8x192xf32> to vector<8x64xf32>
    %48 = arith.mulf %47, %26 : vector<8x64xf32>
    %49 = vector.extract_strided_slice %44 {offsets = [0, 0], sizes = [8, 64], strides = [1, 1]} : vector<8x192xf32> to vector<8x64xf32>
    %50 = arith.mulf %49, %46 : vector<8x64xf32>
    %51 = arith.addf %48, %50 : vector<8x64xf32>
    %52 = vector.extract_strided_slice %44 {offsets = [0, 128], sizes = [8, 64], strides = [1, 1]} : vector<8x192xf32> to vector<8x64xf32>
    %53 = math.tanh %51 : vector<8x64xf32>
    %54 = arith.mulf %52, %53 : vector<8x64xf32>
    %55 = vector.extract_strided_slice %38 {offsets = [0, 0], sizes = [8, 192], strides = [1, 1]} : vector<8x256xf32> to vector<8x192xf32>
    %56 = arith.negf %55 : vector<8x192xf32>
    %57 = math.exp %56 : vector<8x192xf32>
    %cst_21 = arith.constant 1.000000e+00 : f32
    %58 = vector.broadcast %cst_21 : f32 to vector<8x192xf32>
    %59 = arith.addf %58, %57 : vector<8x192xf32>
    %60 = arith.divf %58, %59 : vector<8x192xf32>
    %61 = vector.extract_strided_slice %38 {offsets = [0, 192], sizes = [8, 64], strides = [1, 1]} : vector<8x256xf32> to vector<8x64xf32>
    %62 = math.tanh %61 : vector<8x64xf32>
    %63 = vector.extract_strided_slice %60 {offsets = [0, 64], sizes = [8, 64], strides = [1, 1]} : vector<8x192xf32> to vector<8x64xf32>
    %64 = arith.mulf %63, %12 : vector<8x64xf32>
    %65 = vector.extract_strided_slice %60 {offsets = [0, 0], sizes = [8, 64], strides = [1, 1]} : vector<8x192xf32> to vector<8x64xf32>
    %66 = arith.mulf %65, %62 : vector<8x64xf32>
    %67 = arith.addf %64, %66 : vector<8x64xf32>
    %68 = vector.extract_strided_slice %60 {offsets = [0, 128], sizes = [8, 64], strides = [1, 1]} : vector<8x192xf32> to vector<8x64xf32>
    %69 = math.tanh %67 : vector<8x64xf32>
    %70 = arith.mulf %68, %69 : vector<8x64xf32>
    %c2_i32 = arith.constant 2 : i32
    %c8_i32_22 = arith.constant 8 : i32
    %71 = arith.muli %c2_i32, %c8_i32_22 : i32
    %72 = tpu.assume_multiple %71, 8 : i32
    %73 = arith.index_cast %72 : i32 to index
    %c0_23 = arith.constant 0 : index
    %74 = vector.load %arg9[%73, %c0_23] : memref<64x256xf32, #tpu.memory_space<vmem>>, vector<8x256xf32>
    %cst_24 = arith.constant dense<0.000000e+00> : vector<8x256xf32>
    %75 = tpu.matmul %54, %7, %cst_24 {dimension_numbers = #tpu.dot_dimension_numbers<[1], [0], [0], [1], [0, 0, 1, 1], [], []>} : vector<8x64xf32>, vector<64x256xf32>, vector<8x256xf32> -> vector<8x256xf32>
    %76 = arith.addf %74, %75 : vector<8x256xf32>
    %77 = tpu.concatenate %54, %70 in 1 : vector<8x64xf32>, vector<8x64xf32> -> vector<8x128xf32>
    %cst_25 = arith.constant dense<0.000000e+00> : vector<8x256xf32>
    %78 = tpu.matmul %77, %8, %cst_25 {dimension_numbers = #tpu.dot_dimension_numbers<[1], [0], [0], [1], [0, 0, 1, 1], [], []>} : vector<8x128xf32>, vector<128x256xf32>, vector<8x256xf32> -> vector<8x256xf32>
    %79 = arith.addf %78, %11 : vector<8x256xf32>
    %80 = vector.extract_strided_slice %76 {offsets = [0, 0], sizes = [8, 192], strides = [1, 1]} : vector<8x256xf32> to vector<8x192xf32>
    %81 = arith.negf %80 : vector<8x192xf32>
    %82 = math.exp %81 : vector<8x192xf32>
    %cst_26 = arith.constant 1.000000e+00 : f32
    %83 = vector.broadcast %cst_26 : f32 to vector<8x192xf32>
    %84 = arith.addf %83, %82 : vector<8x192xf32>
    %85 = arith.divf %83, %84 : vector<8x192xf32>
    %86 = vector.extract_strided_slice %76 {offsets = [0, 192], sizes = [8, 64], strides = [1, 1]} : vector<8x256xf32> to vector<8x64xf32>
    %87 = math.tanh %86 : vector<8x64xf32>
    %88 = vector.extract_strided_slice %85 {offsets = [0, 64], sizes = [8, 64], strides = [1, 1]} : vector<8x192xf32> to vector<8x64xf32>
    %89 = arith.mulf %88, %51 : vector<8x64xf32>
    %90 = vector.extract_strided_slice %85 {offsets = [0, 0], sizes = [8, 64], strides = [1, 1]} : vector<8x192xf32> to vector<8x64xf32>
    %91 = arith.mulf %90, %87 : vector<8x64xf32>
    %92 = arith.addf %89, %91 : vector<8x64xf32>
    %93 = vector.extract_strided_slice %85 {offsets = [0, 128], sizes = [8, 64], strides = [1, 1]} : vector<8x192xf32> to vector<8x64xf32>
    %94 = math.tanh %92 : vector<8x64xf32>
    %95 = arith.mulf %93, %94 : vector<8x64xf32>
    %96 = vector.extract_strided_slice %79 {offsets = [0, 0], sizes = [8, 192], strides = [1, 1]} : vector<8x256xf32> to vector<8x192xf32>
    %97 = arith.negf %96 : vector<8x192xf32>
    %98 = math.exp %97 : vector<8x192xf32>
    %cst_27 = arith.constant 1.000000e+00 : f32
    %99 = vector.broadcast %cst_27 : f32 to vector<8x192xf32>
    %100 = arith.addf %99, %98 : vector<8x192xf32>
    %101 = arith.divf %99, %100 : vector<8x192xf32>
    %102 = vector.extract_strided_slice %79 {offsets = [0, 192], sizes = [8, 64], strides = [1, 1]} : vector<8x256xf32> to vector<8x64xf32>
    %103 = math.tanh %102 : vector<8x64xf32>
    %104 = vector.extract_strided_slice %101 {offsets = [0, 64], sizes = [8, 64], strides = [1, 1]} : vector<8x192xf32> to vector<8x64xf32>
    %105 = arith.mulf %104, %67 : vector<8x64xf32>
    %106 = vector.extract_strided_slice %101 {offsets = [0, 0], sizes = [8, 64], strides = [1, 1]} : vector<8x192xf32> to vector<8x64xf32>
    %107 = arith.mulf %106, %103 : vector<8x64xf32>
    %108 = arith.addf %105, %107 : vector<8x64xf32>
    %109 = vector.extract_strided_slice %101 {offsets = [0, 128], sizes = [8, 64], strides = [1, 1]} : vector<8x192xf32> to vector<8x64xf32>
    %110 = math.tanh %108 : vector<8x64xf32>
    %111 = arith.mulf %109, %110 : vector<8x64xf32>
    %c3_i32 = arith.constant 3 : i32
    %c8_i32_28 = arith.constant 8 : i32
    %112 = arith.muli %c3_i32, %c8_i32_28 : i32
    %113 = tpu.assume_multiple %112, 8 : i32
    %114 = arith.index_cast %113 : i32 to index
    %c0_29 = arith.constant 0 : index
    %115 = vector.load %arg9[%114, %c0_29] : memref<64x256xf32, #tpu.memory_space<vmem>>, vector<8x256xf32>
    %cst_30 = arith.constant dense<0.000000e+00> : vector<8x256xf32>
    %116 = tpu.matmul %95, %7, %cst_30 {dimension_numbers = #tpu.dot_dimension_numbers<[1], [0], [0], [1], [0, 0, 1, 1], [], []>} : vector<8x64xf32>, vector<64x256xf32>, vector<8x256xf32> -> vector<8x256xf32>
    %117 = arith.addf %115, %116 : vector<8x256xf32>
    %118 = tpu.concatenate %95, %111 in 1 : vector<8x64xf32>, vector<8x64xf32> -> vector<8x128xf32>
    %cst_31 = arith.constant dense<0.000000e+00> : vector<8x256xf32>
    %119 = tpu.matmul %118, %8, %cst_31 {dimension_numbers = #tpu.dot_dimension_numbers<[1], [0], [0], [1], [0, 0, 1, 1], [], []>} : vector<8x128xf32>, vector<128x256xf32>, vector<8x256xf32> -> vector<8x256xf32>
    %120 = arith.addf %119, %11 : vector<8x256xf32>
    %121 = vector.extract_strided_slice %117 {offsets = [0, 0], sizes = [8, 192], strides = [1, 1]} : vector<8x256xf32> to vector<8x192xf32>
    %122 = arith.negf %121 : vector<8x192xf32>
    %123 = math.exp %122 : vector<8x192xf32>
    %cst_32 = arith.constant 1.000000e+00 : f32
    %124 = vector.broadcast %cst_32 : f32 to vector<8x192xf32>
    %125 = arith.addf %124, %123 : vector<8x192xf32>
    %126 = arith.divf %124, %125 : vector<8x192xf32>
    %127 = vector.extract_strided_slice %117 {offsets = [0, 192], sizes = [8, 64], strides = [1, 1]} : vector<8x256xf32> to vector<8x64xf32>
    %128 = math.tanh %127 : vector<8x64xf32>
    %129 = vector.extract_strided_slice %126 {offsets = [0, 64], sizes = [8, 64], strides = [1, 1]} : vector<8x192xf32> to vector<8x64xf32>
    %130 = arith.mulf %129, %92 : vector<8x64xf32>
    %131 = vector.extract_strided_slice %126 {offsets = [0, 0], sizes = [8, 64], strides = [1, 1]} : vector<8x192xf32> to vector<8x64xf32>
    %132 = arith.mulf %131, %128 : vector<8x64xf32>
    %133 = arith.addf %130, %132 : vector<8x64xf32>
    %134 = vector.extract_strided_slice %126 {offsets = [0, 128], sizes = [8, 64], strides = [1, 1]} : vector<8x192xf32> to vector<8x64xf32>
    %135 = math.tanh %133 : vector<8x64xf32>
    %136 = arith.mulf %134, %135 : vector<8x64xf32>
    %137 = vector.extract_strided_slice %120 {offsets = [0, 0], sizes = [8, 192], strides = [1, 1]} : vector<8x256xf32> to vector<8x192xf32>
    %138 = arith.negf %137 : vector<8x192xf32>
    %139 = math.exp %138 : vector<8x192xf32>
    %cst_33 = arith.constant 1.000000e+00 : f32
    %140 = vector.broadcast %cst_33 : f32 to vector<8x192xf32>
    %141 = arith.addf %140, %139 : vector<8x192xf32>
    %142 = arith.divf %140, %141 : vector<8x192xf32>
    %143 = vector.extract_strided_slice %120 {offsets = [0, 192], sizes = [8, 64], strides = [1, 1]} : vector<8x256xf32> to vector<8x64xf32>
    %144 = math.tanh %143 : vector<8x64xf32>
    %145 = vector.extract_strided_slice %142 {offsets = [0, 64], sizes = [8, 64], strides = [1, 1]} : vector<8x192xf32> to vector<8x64xf32>
    %146 = arith.mulf %145, %108 : vector<8x64xf32>
    %147 = vector.extract_strided_slice %142 {offsets = [0, 0], sizes = [8, 64], strides = [1, 1]} : vector<8x192xf32> to vector<8x64xf32>
    %148 = arith.mulf %147, %144 : vector<8x64xf32>
    %149 = arith.addf %146, %148 : vector<8x64xf32>
    %150 = vector.extract_strided_slice %142 {offsets = [0, 128], sizes = [8, 64], strides = [1, 1]} : vector<8x192xf32> to vector<8x64xf32>
    %151 = math.tanh %149 : vector<8x64xf32>
    %152 = arith.mulf %150, %151 : vector<8x64xf32>
    %c4_i32 = arith.constant 4 : i32
    %c8_i32_34 = arith.constant 8 : i32
    %153 = arith.muli %c4_i32, %c8_i32_34 : i32
    %154 = tpu.assume_multiple %153, 8 : i32
    %155 = arith.index_cast %154 : i32 to index
    %c0_35 = arith.constant 0 : index
    %156 = vector.load %arg9[%155, %c0_35] : memref<64x256xf32, #tpu.memory_space<vmem>>, vector<8x256xf32>
    %cst_36 = arith.constant dense<0.000000e+00> : vector<8x256xf32>
    %157 = tpu.matmul %136, %7, %cst_36 {dimension_numbers = #tpu.dot_dimension_numbers<[1], [0], [0], [1], [0, 0, 1, 1], [], []>} : vector<8x64xf32>, vector<64x256xf32>, vector<8x256xf32> -> vector<8x256xf32>
    %158 = arith.addf %156, %157 : vector<8x256xf32>
    %159 = tpu.concatenate %136, %152 in 1 : vector<8x64xf32>, vector<8x64xf32> -> vector<8x128xf32>
    %cst_37 = arith.constant dense<0.000000e+00> : vector<8x256xf32>
    %160 = tpu.matmul %159, %8, %cst_37 {dimension_numbers = #tpu.dot_dimension_numbers<[1], [0], [0], [1], [0, 0, 1, 1], [], []>} : vector<8x128xf32>, vector<128x256xf32>, vector<8x256xf32> -> vector<8x256xf32>
    %161 = arith.addf %160, %11 : vector<8x256xf32>
    %162 = vector.extract_strided_slice %158 {offsets = [0, 0], sizes = [8, 192], strides = [1, 1]} : vector<8x256xf32> to vector<8x192xf32>
    %163 = arith.negf %162 : vector<8x192xf32>
    %164 = math.exp %163 : vector<8x192xf32>
    %cst_38 = arith.constant 1.000000e+00 : f32
    %165 = vector.broadcast %cst_38 : f32 to vector<8x192xf32>
    %166 = arith.addf %165, %164 : vector<8x192xf32>
    %167 = arith.divf %165, %166 : vector<8x192xf32>
    %168 = vector.extract_strided_slice %158 {offsets = [0, 192], sizes = [8, 64], strides = [1, 1]} : vector<8x256xf32> to vector<8x64xf32>
    %169 = math.tanh %168 : vector<8x64xf32>
    %170 = vector.extract_strided_slice %167 {offsets = [0, 64], sizes = [8, 64], strides = [1, 1]} : vector<8x192xf32> to vector<8x64xf32>
    %171 = arith.mulf %170, %133 : vector<8x64xf32>
    %172 = vector.extract_strided_slice %167 {offsets = [0, 0], sizes = [8, 64], strides = [1, 1]} : vector<8x192xf32> to vector<8x64xf32>
    %173 = arith.mulf %172, %169 : vector<8x64xf32>
    %174 = arith.addf %171, %173 : vector<8x64xf32>
    %175 = vector.extract_strided_slice %167 {offsets = [0, 128], sizes = [8, 64], strides = [1, 1]} : vector<8x192xf32> to vector<8x64xf32>
    %176 = math.tanh %174 : vector<8x64xf32>
    %177 = arith.mulf %175, %176 : vector<8x64xf32>
    %178 = vector.extract_strided_slice %161 {offsets = [0, 0], sizes = [8, 192], strides = [1, 1]} : vector<8x256xf32> to vector<8x192xf32>
    %179 = arith.negf %178 : vector<8x192xf32>
    %180 = math.exp %179 : vector<8x192xf32>
    %cst_39 = arith.constant 1.000000e+00 : f32
    %181 = vector.broadcast %cst_39 : f32 to vector<8x192xf32>
    %182 = arith.addf %181, %180 : vector<8x192xf32>
    %183 = arith.divf %181, %182 : vector<8x192xf32>
    %184 = vector.extract_strided_slice %161 {offsets = [0, 192], sizes = [8, 64], strides = [1, 1]} : vector<8x256xf32> to vector<8x64xf32>
    %185 = math.tanh %184 : vector<8x64xf32>
    %186 = vector.extract_strided_slice %183 {offsets = [0, 64], sizes = [8, 64], strides = [1, 1]} : vector<8x192xf32> to vector<8x64xf32>
    %187 = arith.mulf %186, %149 : vector<8x64xf32>
    %188 = vector.extract_strided_slice %183 {offsets = [0, 0], sizes = [8, 64], strides = [1, 1]} : vector<8x192xf32> to vector<8x64xf32>
    %189 = arith.mulf %188, %185 : vector<8x64xf32>
    %190 = arith.addf %187, %189 : vector<8x64xf32>
    %191 = vector.extract_strided_slice %183 {offsets = [0, 128], sizes = [8, 64], strides = [1, 1]} : vector<8x192xf32> to vector<8x64xf32>
    %192 = math.tanh %190 : vector<8x64xf32>
    %193 = arith.mulf %191, %192 : vector<8x64xf32>
    %c5_i32 = arith.constant 5 : i32
    %c8_i32_40 = arith.constant 8 : i32
    %194 = arith.muli %c5_i32, %c8_i32_40 : i32
    %195 = tpu.assume_multiple %194, 8 : i32
    %196 = arith.index_cast %195 : i32 to index
    %c0_41 = arith.constant 0 : index
    %197 = vector.load %arg9[%196, %c0_41] : memref<64x256xf32, #tpu.memory_space<vmem>>, vector<8x256xf32>
    %cst_42 = arith.constant dense<0.000000e+00> : vector<8x256xf32>
    %198 = tpu.matmul %177, %7, %cst_42 {dimension_numbers = #tpu.dot_dimension_numbers<[1], [0], [0], [1], [0, 0, 1, 1], [], []>} : vector<8x64xf32>, vector<64x256xf32>, vector<8x256xf32> -> vector<8x256xf32>
    %199 = arith.addf %197, %198 : vector<8x256xf32>
    %200 = tpu.concatenate %177, %193 in 1 : vector<8x64xf32>, vector<8x64xf32> -> vector<8x128xf32>
    %cst_43 = arith.constant dense<0.000000e+00> : vector<8x256xf32>
    %201 = tpu.matmul %200, %8, %cst_43 {dimension_numbers = #tpu.dot_dimension_numbers<[1], [0], [0], [1], [0, 0, 1, 1], [], []>} : vector<8x128xf32>, vector<128x256xf32>, vector<8x256xf32> -> vector<8x256xf32>
    %202 = arith.addf %201, %11 : vector<8x256xf32>
    %203 = vector.extract_strided_slice %199 {offsets = [0, 0], sizes = [8, 192], strides = [1, 1]} : vector<8x256xf32> to vector<8x192xf32>
    %204 = arith.negf %203 : vector<8x192xf32>
    %205 = math.exp %204 : vector<8x192xf32>
    %cst_44 = arith.constant 1.000000e+00 : f32
    %206 = vector.broadcast %cst_44 : f32 to vector<8x192xf32>
    %207 = arith.addf %206, %205 : vector<8x192xf32>
    %208 = arith.divf %206, %207 : vector<8x192xf32>
    %209 = vector.extract_strided_slice %199 {offsets = [0, 192], sizes = [8, 64], strides = [1, 1]} : vector<8x256xf32> to vector<8x64xf32>
    %210 = math.tanh %209 : vector<8x64xf32>
    %211 = vector.extract_strided_slice %208 {offsets = [0, 64], sizes = [8, 64], strides = [1, 1]} : vector<8x192xf32> to vector<8x64xf32>
    %212 = arith.mulf %211, %174 : vector<8x64xf32>
    %213 = vector.extract_strided_slice %208 {offsets = [0, 0], sizes = [8, 64], strides = [1, 1]} : vector<8x192xf32> to vector<8x64xf32>
    %214 = arith.mulf %213, %210 : vector<8x64xf32>
    %215 = arith.addf %212, %214 : vector<8x64xf32>
    %216 = vector.extract_strided_slice %208 {offsets = [0, 128], sizes = [8, 64], strides = [1, 1]} : vector<8x192xf32> to vector<8x64xf32>
    %217 = math.tanh %215 : vector<8x64xf32>
    %218 = arith.mulf %216, %217 : vector<8x64xf32>
    %219 = vector.extract_strided_slice %202 {offsets = [0, 0], sizes = [8, 192], strides = [1, 1]} : vector<8x256xf32> to vector<8x192xf32>
    %220 = arith.negf %219 : vector<8x192xf32>
    %221 = math.exp %220 : vector<8x192xf32>
    %cst_45 = arith.constant 1.000000e+00 : f32
    %222 = vector.broadcast %cst_45 : f32 to vector<8x192xf32>
    %223 = arith.addf %222, %221 : vector<8x192xf32>
    %224 = arith.divf %222, %223 : vector<8x192xf32>
    %225 = vector.extract_strided_slice %202 {offsets = [0, 192], sizes = [8, 64], strides = [1, 1]} : vector<8x256xf32> to vector<8x64xf32>
    %226 = math.tanh %225 : vector<8x64xf32>
    %227 = vector.extract_strided_slice %224 {offsets = [0, 64], sizes = [8, 64], strides = [1, 1]} : vector<8x192xf32> to vector<8x64xf32>
    %228 = arith.mulf %227, %190 : vector<8x64xf32>
    %229 = vector.extract_strided_slice %224 {offsets = [0, 0], sizes = [8, 64], strides = [1, 1]} : vector<8x192xf32> to vector<8x64xf32>
    %230 = arith.mulf %229, %226 : vector<8x64xf32>
    %231 = arith.addf %228, %230 : vector<8x64xf32>
    %232 = vector.extract_strided_slice %224 {offsets = [0, 128], sizes = [8, 64], strides = [1, 1]} : vector<8x192xf32> to vector<8x64xf32>
    %233 = math.tanh %231 : vector<8x64xf32>
    %234 = arith.mulf %232, %233 : vector<8x64xf32>
    %c6_i32 = arith.constant 6 : i32
    %c8_i32_46 = arith.constant 8 : i32
    %235 = arith.muli %c6_i32, %c8_i32_46 : i32
    %236 = tpu.assume_multiple %235, 8 : i32
    %237 = arith.index_cast %236 : i32 to index
    %c0_47 = arith.constant 0 : index
    %238 = vector.load %arg9[%237, %c0_47] : memref<64x256xf32, #tpu.memory_space<vmem>>, vector<8x256xf32>
    %cst_48 = arith.constant dense<0.000000e+00> : vector<8x256xf32>
    %239 = tpu.matmul %218, %7, %cst_48 {dimension_numbers = #tpu.dot_dimension_numbers<[1], [0], [0], [1], [0, 0, 1, 1], [], []>} : vector<8x64xf32>, vector<64x256xf32>, vector<8x256xf32> -> vector<8x256xf32>
    %240 = arith.addf %238, %239 : vector<8x256xf32>
    %241 = tpu.concatenate %218, %234 in 1 : vector<8x64xf32>, vector<8x64xf32> -> vector<8x128xf32>
    %cst_49 = arith.constant dense<0.000000e+00> : vector<8x256xf32>
    %242 = tpu.matmul %241, %8, %cst_49 {dimension_numbers = #tpu.dot_dimension_numbers<[1], [0], [0], [1], [0, 0, 1, 1], [], []>} : vector<8x128xf32>, vector<128x256xf32>, vector<8x256xf32> -> vector<8x256xf32>
    %243 = arith.addf %242, %11 : vector<8x256xf32>
    %244 = vector.extract_strided_slice %240 {offsets = [0, 0], sizes = [8, 192], strides = [1, 1]} : vector<8x256xf32> to vector<8x192xf32>
    %245 = arith.negf %244 : vector<8x192xf32>
    %246 = math.exp %245 : vector<8x192xf32>
    %cst_50 = arith.constant 1.000000e+00 : f32
    %247 = vector.broadcast %cst_50 : f32 to vector<8x192xf32>
    %248 = arith.addf %247, %246 : vector<8x192xf32>
    %249 = arith.divf %247, %248 : vector<8x192xf32>
    %250 = vector.extract_strided_slice %240 {offsets = [0, 192], sizes = [8, 64], strides = [1, 1]} : vector<8x256xf32> to vector<8x64xf32>
    %251 = math.tanh %250 : vector<8x64xf32>
    %252 = vector.extract_strided_slice %249 {offsets = [0, 64], sizes = [8, 64], strides = [1, 1]} : vector<8x192xf32> to vector<8x64xf32>
    %253 = arith.mulf %252, %215 : vector<8x64xf32>
    %254 = vector.extract_strided_slice %249 {offsets = [0, 0], sizes = [8, 64], strides = [1, 1]} : vector<8x192xf32> to vector<8x64xf32>
    %255 = arith.mulf %254, %251 : vector<8x64xf32>
    %256 = arith.addf %253, %255 : vector<8x64xf32>
    %257 = vector.extract_strided_slice %249 {offsets = [0, 128], sizes = [8, 64], strides = [1, 1]} : vector<8x192xf32> to vector<8x64xf32>
    %258 = math.tanh %256 : vector<8x64xf32>
    %259 = arith.mulf %257, %258 : vector<8x64xf32>
    %260 = vector.extract_strided_slice %243 {offsets = [0, 0], sizes = [8, 192], strides = [1, 1]} : vector<8x256xf32> to vector<8x192xf32>
    %261 = arith.negf %260 : vector<8x192xf32>
    %262 = math.exp %261 : vector<8x192xf32>
    %cst_51 = arith.constant 1.000000e+00 : f32
    %263 = vector.broadcast %cst_51 : f32 to vector<8x192xf32>
    %264 = arith.addf %263, %262 : vector<8x192xf32>
    %265 = arith.divf %263, %264 : vector<8x192xf32>
    %266 = vector.extract_strided_slice %243 {offsets = [0, 192], sizes = [8, 64], strides = [1, 1]} : vector<8x256xf32> to vector<8x64xf32>
    %267 = math.tanh %266 : vector<8x64xf32>
    %268 = vector.extract_strided_slice %265 {offsets = [0, 64], sizes = [8, 64], strides = [1, 1]} : vector<8x192xf32> to vector<8x64xf32>
    %269 = arith.mulf %268, %231 : vector<8x64xf32>
    %270 = vector.extract_strided_slice %265 {offsets = [0, 0], sizes = [8, 64], strides = [1, 1]} : vector<8x192xf32> to vector<8x64xf32>
    %271 = arith.mulf %270, %267 : vector<8x64xf32>
    %272 = arith.addf %269, %271 : vector<8x64xf32>
    %273 = vector.extract_strided_slice %265 {offsets = [0, 128], sizes = [8, 64], strides = [1, 1]} : vector<8x192xf32> to vector<8x64xf32>
    %274 = math.tanh %272 : vector<8x64xf32>
    %275 = arith.mulf %273, %274 : vector<8x64xf32>
    %c7_i32 = arith.constant 7 : i32
    %c8_i32_52 = arith.constant 8 : i32
    %276 = arith.muli %c7_i32, %c8_i32_52 : i32
    %277 = tpu.assume_multiple %276, 8 : i32
    %278 = arith.index_cast %277 : i32 to index
    %c0_53 = arith.constant 0 : index
    %279 = vector.load %arg9[%278, %c0_53] : memref<64x256xf32, #tpu.memory_space<vmem>>, vector<8x256xf32>
    %cst_54 = arith.constant dense<0.000000e+00> : vector<8x256xf32>
    %280 = tpu.matmul %259, %7, %cst_54 {dimension_numbers = #tpu.dot_dimension_numbers<[1], [0], [0], [1], [0, 0, 1, 1], [], []>} : vector<8x64xf32>, vector<64x256xf32>, vector<8x256xf32> -> vector<8x256xf32>
    %281 = arith.addf %279, %280 : vector<8x256xf32>
    %282 = tpu.concatenate %259, %275 in 1 : vector<8x64xf32>, vector<8x64xf32> -> vector<8x128xf32>
    %cst_55 = arith.constant dense<0.000000e+00> : vector<8x256xf32>
    %283 = tpu.matmul %282, %8, %cst_55 {dimension_numbers = #tpu.dot_dimension_numbers<[1], [0], [0], [1], [0, 0, 1, 1], [], []>} : vector<8x128xf32>, vector<128x256xf32>, vector<8x256xf32> -> vector<8x256xf32>
    %284 = arith.addf %283, %11 : vector<8x256xf32>
    %285 = vector.extract_strided_slice %281 {offsets = [0, 0], sizes = [8, 192], strides = [1, 1]} : vector<8x256xf32> to vector<8x192xf32>
    %286 = arith.negf %285 : vector<8x192xf32>
    %287 = math.exp %286 : vector<8x192xf32>
    %cst_56 = arith.constant 1.000000e+00 : f32
    %288 = vector.broadcast %cst_56 : f32 to vector<8x192xf32>
    %289 = arith.addf %288, %287 : vector<8x192xf32>
    %290 = arith.divf %288, %289 : vector<8x192xf32>
    %291 = vector.extract_strided_slice %281 {offsets = [0, 192], sizes = [8, 64], strides = [1, 1]} : vector<8x256xf32> to vector<8x64xf32>
    %292 = math.tanh %291 : vector<8x64xf32>
    %293 = vector.extract_strided_slice %290 {offsets = [0, 64], sizes = [8, 64], strides = [1, 1]} : vector<8x192xf32> to vector<8x64xf32>
    %294 = arith.mulf %293, %256 : vector<8x64xf32>
    %295 = vector.extract_strided_slice %290 {offsets = [0, 0], sizes = [8, 64], strides = [1, 1]} : vector<8x192xf32> to vector<8x64xf32>
    %296 = arith.mulf %295, %292 : vector<8x64xf32>
    %297 = arith.addf %294, %296 : vector<8x64xf32>
    %298 = vector.extract_strided_slice %290 {offsets = [0, 128], sizes = [8, 64], strides = [1, 1]} : vector<8x192xf32> to vector<8x64xf32>
    %299 = math.tanh %297 : vector<8x64xf32>
    %300 = arith.mulf %298, %299 : vector<8x64xf32>
    %301 = vector.extract_strided_slice %284 {offsets = [0, 0], sizes = [8, 192], strides = [1, 1]} : vector<8x256xf32> to vector<8x192xf32>
    %302 = arith.negf %301 : vector<8x192xf32>
    %303 = math.exp %302 : vector<8x192xf32>
    %cst_57 = arith.constant 1.000000e+00 : f32
    %304 = vector.broadcast %cst_57 : f32 to vector<8x192xf32>
    %305 = arith.addf %304, %303 : vector<8x192xf32>
    %306 = arith.divf %304, %305 : vector<8x192xf32>
    %307 = vector.extract_strided_slice %284 {offsets = [0, 192], sizes = [8, 64], strides = [1, 1]} : vector<8x256xf32> to vector<8x64xf32>
    %308 = math.tanh %307 : vector<8x64xf32>
    %309 = vector.extract_strided_slice %306 {offsets = [0, 64], sizes = [8, 64], strides = [1, 1]} : vector<8x192xf32> to vector<8x64xf32>
    %310 = arith.mulf %309, %272 : vector<8x64xf32>
    %311 = vector.extract_strided_slice %306 {offsets = [0, 0], sizes = [8, 64], strides = [1, 1]} : vector<8x192xf32> to vector<8x64xf32>
    %312 = arith.mulf %311, %308 : vector<8x64xf32>
    %313 = arith.addf %310, %312 : vector<8x64xf32>
    %314 = vector.extract_strided_slice %306 {offsets = [0, 128], sizes = [8, 64], strides = [1, 1]} : vector<8x192xf32> to vector<8x64xf32>
    %315 = math.tanh %313 : vector<8x64xf32>
    %316 = arith.mulf %314, %315 : vector<8x64xf32>
    %c7_i32_58 = arith.constant 7 : i32
    %317 = tpu.concatenate %300, %316 in 1 : vector<8x64xf32>, vector<8x64xf32> -> vector<8x128xf32>
    %cst_59 = arith.constant dense<0.000000e+00> : vector<8x256xf32>
    %318 = tpu.matmul %317, %8, %cst_59 {dimension_numbers = #tpu.dot_dimension_numbers<[1], [0], [0], [1], [0, 0, 1, 1], [], []>} : vector<8x128xf32>, vector<128x256xf32>, vector<8x256xf32> -> vector<8x256xf32>
    %319 = arith.addf %318, %11 : vector<8x256xf32>
    %320 = vector.extract_strided_slice %319 {offsets = [0, 0], sizes = [8, 192], strides = [1, 1]} : vector<8x256xf32> to vector<8x192xf32>
    %321 = arith.negf %320 : vector<8x192xf32>
    %322 = math.exp %321 : vector<8x192xf32>
    %cst_60 = arith.constant 1.000000e+00 : f32
    %323 = vector.broadcast %cst_60 : f32 to vector<8x192xf32>
    %324 = arith.addf %323, %322 : vector<8x192xf32>
    %325 = arith.divf %323, %324 : vector<8x192xf32>
    %326 = vector.extract_strided_slice %319 {offsets = [0, 192], sizes = [8, 64], strides = [1, 1]} : vector<8x256xf32> to vector<8x64xf32>
    %327 = math.tanh %326 : vector<8x64xf32>
    %328 = vector.extract_strided_slice %325 {offsets = [0, 64], sizes = [8, 64], strides = [1, 1]} : vector<8x192xf32> to vector<8x64xf32>
    %329 = arith.mulf %328, %313 : vector<8x64xf32>
    %330 = vector.extract_strided_slice %325 {offsets = [0, 0], sizes = [8, 64], strides = [1, 1]} : vector<8x192xf32> to vector<8x64xf32>
    %331 = arith.mulf %330, %327 : vector<8x64xf32>
    %332 = arith.addf %329, %331 : vector<8x64xf32>
    %333 = vector.extract_strided_slice %325 {offsets = [0, 128], sizes = [8, 64], strides = [1, 1]} : vector<8x192xf32> to vector<8x64xf32>
    %334 = math.tanh %332 : vector<8x64xf32>
    %335 = arith.mulf %333, %334 : vector<8x64xf32>
    %c0_61 = arith.constant 0 : index
    %c0_62 = arith.constant 0 : index
    %336 = vector.load %arg6[%c0_61, %c0_62] : memref<64x1xf32, #tpu.memory_space<vmem>>, vector<64x1xf32>
    %cst_63 = arith.constant dense<0.000000e+00> : vector<8x1xf32>
    %337 = tpu.matmul %335, %336, %cst_63 {dimension_numbers = #tpu.dot_dimension_numbers<[1], [0], [0], [1], [0, 0, 1, 1], [], []>} : vector<8x64xf32>, vector<64x1xf32>, vector<8x1xf32> -> vector<8x1xf32>
    %c0_64 = arith.constant 0 : index
    %c0_65 = arith.constant 0 : index
    %338 = vector.load %arg7[%c0_64, %c0_65] : memref<1x1xf32, #tpu.memory_space<vmem>>, vector<1x1xf32>
    %339 = vector.broadcast %338 : vector<1x1xf32> to vector<8x1xf32>
    %340 = arith.addf %337, %339 : vector<8x1xf32>
    %c0_66 = arith.constant 0 : index
    %c0_67 = arith.constant 0 : index
    %341 = vector.load %arg8[%c0_66, %c0_67] : memref<8x1xf32, #tpu.memory_space<vmem>>, vector<8x1xf32>
    tpu.vector_store %arg8[%c0_66, %c0_67], %340 {strides = array<i32>} : memref<8x1xf32, #tpu.memory_space<vmem>>, vector<8x1xf32>,
    return
  }
}

</mosaic_0001>

<llo_original>
// kernel: tpu_custom_call.1
$region0: #{tpu_custom_call.1}
  #allocation0 [shape = 'u32[]', space=smem, size = 0x4, offset = 0x4, fixed_abs, tag = 'smem constant byte address 0x4 - core index']
  #allocation1 [shape = 'u32[144,128]{1,0:T(1,128)}', space=vmem, size = 0x12000, scoped, tag = 'internal scratch']
  #allocation2 [shape = 'f32[64,256]{1,0:T(8,128)}', space=vmem, size = 0x10000, scoped, tag = 'scratch operand']
  #allocation3 [shape = 'f32[1,1]{1,0:T(1,128)S(1)}', space=vmem, size = 0x200, scoped, tag = 'scoped memory for tpu_custom_call.1']
  %s0 = inlined_call_operand.vmem [shape: f32[64,16], index: 0, kind: input, shape index: {}]
  %s1 = inlined_call_operand.hbm [shape: f32[16,256], index: 1, kind: input, shape index: {}]
  %s2 = inlined_call_operand.vmem [shape: f32[64,256], index: 2, kind: input, shape index: {}]
  %s3 = inlined_call_operand.vmem [shape: f32[1,256], index: 3, kind: input, shape index: {}]
  %s4 = inlined_call_operand.hbm [shape: f32[128,256], index: 4, kind: input, shape index: {}]
  %s5 = inlined_call_operand.vmem [shape: f32[1,256], index: 5, kind: input, shape index: {}]
  %s6 = inlined_call_operand.vmem [shape: f32[64,1], index: 6, kind: input, shape index: {}]
  %s7 = inlined_call_operand.<no memory space> [shape: f32[1,1], index: 7, kind: input, shape index: {}]
  %s8 = inlined_call_operand.vmem [shape: f32[8,1], index: 8, kind: output, shape index: {}]
  %s9 = sld [smem:[#allocation0]]
  $region50: #{tpu_custom_call.1} parent=0
    _
  %s11 = ssub.s32 1, %s9
  %s12 = scalar_select 0, %s11, %s9
  %v13 = vstv %s7
  %14 = vst [vmem:[#allocation3] sm:$0x1] %v13
  $region1: #{tpu_custom_call.1} parent=0
    #allocation4 [shape = 'u8[16384]{0}', space=vmem, size = 0x4000, scoped, tag = 'input window, operand 1, single buffered']
    #allocation5 [shape = 's32[1]{0}', space=sflag, size = 0x4, scoped, tag = 'scoped memory for tpu_custom_call.1']
    #allocation6 [shape = 'u8[131072]{0}', space=vmem, size = 0x20000, scoped, tag = 'input window, operand 4, single buffered']
    #allocation7 [shape = 's32[1]{0}', space=sflag, size = 0x4, scoped, tag = 'scoped memory for tpu_custom_call.1']
    %15 = vsyncpa [#allocation5], 0
    %16 = vsyncpa [#allocation7], 0
    // Predicated region
    $region2: #{tpu_custom_call.1} parent=1 // pred_check
      _
    $region3: #{tpu_custom_call.1} parent=1 // pred_check_branch
      %18 = sbr.rel (0) target = $region5
    $region4: #{tpu_custom_call.1} parent=1 // pred_region
      _
    $region5: #{tpu_custom_call.1} parent=1 // pred_fallthru
      _
    // Predicated region
    $region6: #{tpu_custom_call.1} parent=1 // pred_check
      _
    $region7: #{tpu_custom_call.1} parent=1 // pred_check_branch
      %20 = sbr.rel (0) target = $region9
    $region8: #{tpu_custom_call.1} parent=1 // pred_region
      %s22 = ssub.s32 512, 512
      %23 = vsyncadd [#allocation5], %s22
      %s24 = sshll.u32 [#allocation4], 4
      %s25 = int_to_ptr.vmem [resolvable:$true] %s24
      %30 = dma.hbm_to_vmem [thread:$0]  %s1, 512, %s25, [#allocation5], 256, 256, 16
    $region9: #{tpu_custom_call.1} parent=1 // pred_fallthru
      _
    // Predicated region
    $region10: #{tpu_custom_call.1} parent=1 // pred_check
      _
    $region11: #{tpu_custom_call.1} parent=1 // pred_check_branch
      %32 = sbr.rel (0) target = $region13
    $region12: #{tpu_custom_call.1} parent=1 // pred_region
      _
    $region13: #{tpu_custom_call.1} parent=1 // pred_fallthru
      _
    // Predicated region
    $region14: #{tpu_custom_call.1} parent=1 // pred_check
      _
    $region15: #{tpu_custom_call.1} parent=1 // pred_check_branch
      %34 = sbr.rel (0) target = $region17
    $region16: #{tpu_custom_call.1} parent=1 // pred_region
      _
    $region17: #{tpu_custom_call.1} parent=1 // pred_fallthru
      _
    // Predicated region
    $region18: #{tpu_custom_call.1} parent=1 // pred_check
      _
    $region19: #{tpu_custom_call.1} parent=1 // pred_check_branch
      %36 = sbr.rel (0) target = $region21
    $region20: #{tpu_custom_call.1} parent=1 // pred_region
      %s38 = ssub.s32 4096, 4096
      %39 = vsyncadd [#allocation7], %s38
      %s40 = sshll.u32 [#allocation6], 4
      %s41 = int_to_ptr.vmem [resolvable:$true] %s40
      %46 = dma.hbm_to_vmem [thread:$0]  %s4, 4096, %s41, [#allocation7], 256, 256, 16
    $region21: #{tpu_custom_call.1} parent=1 // pred_fallthru
      _
    // Predicated region
    $region22: #{tpu_custom_call.1} parent=1 // pred_check
      _
    $region23: #{tpu_custom_call.1} parent=1 // pred_check_branch
      %48 = sbr.rel (0) target = $region25
    $region24: #{tpu_custom_call.1} parent=1 // pred_region
      _
    $region25: #{tpu_custom_call.1} parent=1 // pred_fallthru
      _
    // Predicated region
    $region26: #{tpu_custom_call.1} parent=1 // pred_check
      _
    $region27: #{tpu_custom_call.1} parent=1 // pred_check_branch
      %50 = sbr.rel (0) target = $region29
    $region28: #{tpu_custom_call.1} parent=1 // pred_region
      _
    $region29: #{tpu_custom_call.1} parent=1 // pred_fallthru
      _
    // Predicated region
    $region30: #{tpu_custom_call.1} parent=1 // pred_check
      _
    $region31: #{tpu_custom_call.1} parent=1 // pred_check_branch
      %52 = sbr.rel (0) target = $region33
    $region32: #{tpu_custom_call.1} parent=1 // pred_region
      _
    $region33: #{tpu_custom_call.1} parent=1 // pred_fallthru
      _
    // Predicated region
    $region34: #{tpu_custom_call.1} parent=1 // pred_check
      _
    $region35: #{tpu_custom_call.1} parent=1 // pred_check_branch
      %54 = sbr.rel (0) target = $region37
    $region36: #{tpu_custom_call.1} parent=1 // pred_region
      %55 = dma.done [#allocation5], 512
    $region37: #{tpu_custom_call.1} parent=1 // pred_fallthru
      _
    // Predicated region
    $region38: #{tpu_custom_call.1} parent=1 // pred_check
      _
    $region39: #{tpu_custom_call.1} parent=1 // pred_check_branch
      %57 = sbr.rel (0) target = $region41
    $region40: #{tpu_custom_call.1} parent=1 // pred_region
      %58 = dma.done [#allocation7], 4096
    $region41: #{tpu_custom_call.1} parent=1 // pred_fallthru
      _
    %v59 = vld [vmem:[%s0] sm:$0xff]
    %v60 = vld [vmem:[%s0 + $0x8] sm:$0xff]
    %v61 = vld [vmem:[%s0 + $0x10] sm:$0xff]
    %v62 = vld [vmem:[%s0 + $0x18] sm:$0xff]
    %v63 = vld [vmem:[%s0 + $0x20] sm:$0xff]
    %v64 = vld [vmem:[%s0 + $0x28] sm:$0xff]
    %v65 = vld [vmem:[%s0 + $0x30] sm:$0xff]
    %v66 = vld [vmem:[%s0 + $0x38] sm:$0xff]
    %v67 = vld [vmem:[#allocation4] sm:$0xff]
    %v68 = vld [vmem:[#allocation4 + $0x8] sm:$0xff]
    %v69 = vld [vmem:[#allocation4 + $0x10] sm:$0xff]
    %v70 = vld [vmem:[#allocation4 + $0x18] sm:$0xff]
    %v71 = vld [vmem:[%s3] sm:$0x3]
    %v73 = vlaneseq
    %v74 = vshrl.u32 %v73, 7
    %v75 = vsub.s32 0, %v74
    %v76 = vrot.slane %v71, %v75
    %v77 = vlaneseq
    %v78 = vshrl.u32 %v77, 7
    %v79 = vsub.s32 1, %v78
    %v80 = vrot.slane %v71, %v79
    %vm83 = vcmask 130048
    %v85 = vsel %vm83, %v59, 0
    %v88 = vsel %vm83, %v60, 0
    %v91 = vsel %vm83, %v61, 0
    %v94 = vsel %vm83, %v62, 0
    %v97 = vsel %vm83, %v63, 0
    %v100 = vsel %vm83, %v64, 0
    %v103 = vsel %vm83, %v65, 0
    %v106 = vsel %vm83, %v66, 0
    %108 = vmatprep.subr.mxu0 %v68
    %109 = vmatpush1.msra.mxu0 %v67
    %110 = vmatprep.subr.mxu0 %v70
    %111 = vmatpush1.msra.mxu0 %v69
    %112 = vmatprep.subr.mxu0 0.0
    %113 = vmatpush1.msra.mxu0 0.0
    %114 = vmatprep.subr.mxu0 0.0
    %115 = vmatpush1.msra.mxu0 0.0
    %116 = vmatprep.subr.mxu0 0.0
    %117 = vmatpush1.msra.mxu0 0.0
    %118 = vmatprep.subr.mxu0 0.0
    %119 = vmatpush1.msra.mxu0 0.0
    %120 = vmatprep.subr.mxu0 0.0
    %121 = vmatpush1.msra.mxu0 0.0
    %122 = vmatprep.subr.mxu0 0.0
    %123 = vmatpush1.msra.mxu0 0.0
    %124 = vmatprep.subr.mxu0 0.0
    %125 = vmatpush1.msra.mxu0 0.0
    %126 = vmatprep.subr.mxu0 0.0
    %127 = vmatpush1.msra.mxu0 0.0
    %128 = vmatprep.subr.mxu0 0.0
    %129 = vmatpush1.msra.mxu0 0.0
    %130 = vmatprep.subr.mxu0 0.0
    %131 = vmatpush1.msra.mxu0 0.0
    %132 = vmatprep.subr.mxu0 0.0
    %133 = vmatpush1.msra.mxu0 0.0
    %134 = vmatprep.subr.mxu0 0.0
    %135 = vmatpush1.msra.mxu0 0.0
    %136 = vmatprep.subr.mxu0 0.0
    %137 = vmatpush1.msra.mxu0 0.0
    %138 = vmatprep.subr.mxu0 0.0
    %139 = vmatpush1.msra.mxu0 0.0
    %140 = vmatprep.subr.mxu0 0.0
    %141 = vmatpush1.msra.mxu0 0.0
    %142 = vmatprep.subr.mxu0 0.0
    %143 = vmatpush1.msra.mxu0 0.0
    %144 = vmatprep.subr.mxu0 0.0
    %145 = vmatpush1.msra.mxu0 0.0
    %146 = vmatprep.subr.mxu0 0.0
    %147 = vmatpush1.msra.mxu0 0.0
    %148 = vmatprep.subr.mxu0 0.0
    %149 = vmatpush1.msra.mxu0 0.0
    %150 = vmatprep.subr.mxu0 0.0
    %151 = vmatpush1.msra.mxu0 0.0
    %152 = vmatprep.subr.mxu0 0.0
    %153 = vmatpush1.msra.mxu0 0.0
    %154 = vmatprep.subr.mxu0 0.0
    %155 = vmatpush1.msra.mxu0 0.0
    %156 = vmatprep.subr.mxu0 0.0
    %157 = vmatpush1.msra.mxu0 0.0
    %158 = vmatprep.subr.mxu0 0.0
    %159 = vmatpush1.msra.mxu0 0.0
    %160 = vmatprep.subr.mxu0 0.0
    %161 = vmatpush1.msra.mxu0 0.0
    %162 = vmatprep.subr.mxu0 0.0
    %163 = vmatpush1.msra.mxu0 0.0
    %164 = vmatprep.subr.mxu0 0.0
    %165 = vmatpush1.msra.mxu0 0.0
    %166 = vmatprep.subr.mxu0 0.0
    %167 = vmatpush1.msra.mxu0 0.0
    %168 = vmatprep.subr.mxu0 0.0
    %169 = vmatpush1.msra.mxu0 0.0
    %170 = vmatprep.subr.mxu0 0.0
    %171 = vmatpush1.msra.mxu0 0.0
    %172 = vmatprep.mubr.f32.mxu0 0.0
    %173 = vmatmul.mubr.f32.gmra.mrb[0].mxu0 %v85
    %v174 = vpop.f32.mrb[0].mxu0
    %v175 = vadd.f32 %v76, %v174
    %v176 = vpop.f32.mrb[0].mxu0
    %v177 = vadd.f32 %v80, %v176
    %178 = vmatprep.mubr.f32.mxu0 0.0
    %179 = vmatmul.mubr.f32.gmra.mrb[0].mxu0 %v88
    %v180 = vpop.f32.mrb[0].mxu0
    %v181 = vadd.f32 %v76, %v180
    %v182 = vpop.f32.mrb[0].mxu0
    %v183 = vadd.f32 %v80, %v182
    %184 = vmatprep.mubr.f32.mxu0 0.0
    %185 = vmatmul.mubr.f32.gmra.mrb[0].mxu0 %v91
    %v186 = vpop.f32.mrb[0].mxu0
    %v187 = vadd.f32 %v76, %v186
    %v188 = vpop.f32.mrb[0].mxu0
    %v189 = vadd.f32 %v80, %v188
    %190 = vmatprep.mubr.f32.mxu0 0.0
    %191 = vmatmul.mubr.f32.gmra.mrb[0].mxu0 %v94
    %v192 = vpop.f32.mrb[0].mxu0
    %v193 = vadd.f32 %v76, %v192
    %v194 = vpop.f32.mrb[0].mxu0
    %v195 = vadd.f32 %v80, %v194
    %196 = vmatprep.mubr.f32.mxu0 0.0
    %197 = vmatmul.mubr.f32.gmra.mrb[0].mxu0 %v97
    %v198 = vpop.f32.mrb[0].mxu0
    %v199 = vadd.f32 %v76, %v198
    %v200 = vpop.f32.mrb[0].mxu0
    %v201 = vadd.f32 %v80, %v200
    %202 = vmatprep.mubr.f32.mxu0 0.0
    %203 = vmatmul.mubr.f32.gmra.mrb[0].mxu0 %v100
    %v204 = vpop.f32.mrb[0].mxu0
    %v205 = vadd.f32 %v76, %v204
    %v206 = vpop.f32.mrb[0].mxu0
    %v207 = vadd.f32 %v80, %v206
    %208 = vmatprep.mubr.f32.mxu0 0.0
    %209 = vmatmul.mubr.f32.gmra.mrb[0].mxu0 %v103
    %v210 = vpop.f32.mrb[0].mxu0
    %v211 = vadd.f32 %v76, %v210
    %v212 = vpop.f32.mrb[0].mxu0
    %v213 = vadd.f32 %v80, %v212
    %214 = vmatprep.mubr.f32.mxu0 0.0
    %215 = vmatmul.mubr.f32.gmra.mrb[0].mxu0 %v106
    %v216 = vpop.f32.mrb[0].mxu0
    %v217 = vadd.f32 %v76, %v216
    %v218 = vpop.f32.mrb[0].mxu0
    %v219 = vadd.f32 %v80, %v218
    %220 = vdwg.mxu0
    %221 = vst [vmem:[#allocation2] sm:$0xff] %v175
    %222 = vst [vmem:[#allocation2 + $0x8] sm:$0xff] %v177
    %223 = vst [vmem:[#allocation2 + $0x10] sm:$0xff] %v181
    %224 = vst [vmem:[#allocation2 + $0x18] sm:$0xff] %v183
    %225 = vst [vmem:[#allocation2 + $0x20] sm:$0xff] %v187
    %226 = vst [vmem:[#allocation2 + $0x28] sm:$0xff] %v189
    %227 = vst [vmem:[#allocation2 + $0x30] sm:$0xff] %v193
    %228 = vst [vmem:[#allocation2 + $0x38] sm:$0xff] %v195
    %229 = vst [vmem:[#allocation2 + $0x40] sm:$0xff] %v199
    %230 = vst [vmem:[#allocation2 + $0x48] sm:$0xff] %v201
    %231 = vst [vmem:[#allocation2 + $0x50] sm:$0xff] %v205
    %232 = vst [vmem:[#allocation2 + $0x58] sm:$0xff] %v207
    %233 = vst [vmem:[#allocation2 + $0x60] sm:$0xff] %v211
    %234 = vst [vmem:[#allocation2 + $0x68] sm:$0xff] %v213
    %235 = vst [vmem:[#allocation2 + $0x70] sm:$0xff] %v217
    %236 = vst [vmem:[#allocation2 + $0x78] sm:$0xff] %v219
    %v237 = vld [vmem:[%s2] sm:$0xff]
    %v238 = vld [vmem:[%s2 + $0x8] sm:$0xff]
    %v239 = vld [vmem:[%s2 + $0x10] sm:$0xff]
    %v240 = vld [vmem:[%s2 + $0x18] sm:$0xff]
    %v241 = vld [vmem:[%s2 + $0x20] sm:$0xff]
    %v242 = vld [vmem:[%s2 + $0x28] sm:$0xff]
    %v243 = vld [vmem:[%s2 + $0x30] sm:$0xff]
    %v244 = vld [vmem:[%s2 + $0x38] sm:$0xff]
    %v245 = vld [vmem:[%s2 + $0x40] sm:$0xff]
    %v246 = vld [vmem:[%s2 + $0x48] sm:$0xff]
    %v247 = vld [vmem:[%s2 + $0x50] sm:$0xff]
    %v248 = vld [vmem:[%s2 + $0x58] sm:$0xff]
    %v249 = vld [vmem:[%s2 + $0x60] sm:$0xff]
    %v250 = vld [vmem:[%s2 + $0x68] sm:$0xff]
    %v251 = vld [vmem:[%s2 + $0x70] sm:$0xff]
    %v252 = vld [vmem:[%s2 + $0x78] sm:$0xff]
    %v253 = vld [vmem:[#allocation6] sm:$0xff]
    %v254 = vld [vmem:[#allocation6 + $0x8] sm:$0xff]
    %v255 = vld [vmem:[#allocation6 + $0x10] sm:$0xff]
    %v256 = vld [vmem:[#allocation6 + $0x18] sm:$0xff]
    %v257 = vld [vmem:[#allocation6 + $0x20] sm:$0xff]
    %v258 = vld [vmem:[#allocation6 + $0x28] sm:$0xff]
    %v259 = vld [vmem:[#allocation6 + $0x30] sm:$0xff]
    %v260 = vld [vmem:[#allocation6 + $0x38] sm:$0xff]
    %v261 = vld [vmem:[#allocation6 + $0x40] sm:$0xff]
    %v262 = vld [vmem:[#allocation6 + $0x48] sm:$0xff]
    %v263 = vld [vmem:[#allocation6 + $0x50] sm:$0xff]
    %v264 = vld [vmem:[#allocation6 + $0x58] sm:$0xff]
    %v265 = vld [vmem:[#allocation6 + $0x60] sm:$0xff]
    %v266 = vld [vmem:[#allocation6 + $0x68] sm:$0xff]
    %v267 = vld [vmem:[#allocation6 + $0x70] sm:$0xff]
    %v268 = vld [vmem:[#allocation6 + $0x78] sm:$0xff]
    %v269 = vld [vmem:[#allocation6 + $0x80] sm:$0xff]
    %v270 = vld [vmem:[#allocation6 + $0x88] sm:$0xff]
    %v271 = vld [vmem:[#allocation6 + $0x90] sm:$0xff]
    %v272 = vld [vmem:[#allocation6 + $0x98] sm:$0xff]
    %v273 = vld [vmem:[#allocation6 + $0xa0] sm:$0xff]
    %v274 = vld [vmem:[#allocation6 + $0xa8] sm:$0xff]
    %v275 = vld [vmem:[#allocation6 + $0xb0] sm:$0xff]
    %v276 = vld [vmem:[#allocation6 + $0xb8] sm:$0xff]
    %v277 = vld [vmem:[#allocation6 + $0xc0] sm:$0xff]
    %v278 = vld [vmem:[#allocation6 + $0xc8] sm:$0xff]
    %v279 = vld [vmem:[#allocation6 + $0xd0] sm:$0xff]
    %v280 = vld [vmem:[#allocation6 + $0xd8] sm:$0xff]
    %v281 = vld [vmem:[#allocation6 + $0xe0] sm:$0xff]
    %v282 = vld [vmem:[#allocation6 + $0xe8] sm:$0xff]
    %v283 = vld [vmem:[#allocation6 + $0xf0] sm:$0xff]
    %v284 = vld [vmem:[#allocation6 + $0xf8] sm:$0xff]
    %v285 = vld [vmem:[%s5] sm:$0x3]
    %v287 = vlaneseq
    %v288 = vshrl.u32 %v287, 7
    %v289 = vsub.s32 0, %v288
    %v290 = vrot.slane %v285, %v289
    %v291 = vlaneseq
    %v292 = vshrl.u32 %v291, 7
    %v293 = vsub.s32 1, %v292
    %v294 = vrot.slane %v285, %v293
    %v297 = vld [vmem:[#allocation2] sm:$0xff]
    %v298 = vld [vmem:[#allocation2 + $0x8] sm:$0xff]
    %v299 = vxor.u32 %v297, 2147483648
    %v300 = vxor.u32 %v298, 2147483648
    %v301 = vmul.f32 %v299, 1.442695
    %v302 = vpow.pop %v301
    %v303 = vmul.f32 %v300, 1.442695
    %v304 = vpow.pop %v303
    %v305 = vadd.f32 %v302, 1.0
    %v306 = vadd.f32 %v304, 1.0
    %v307 = vrcp.pop %v305
    %v308 = vmul.f32 1.0, %v307
    %v309 = vrcp.pop %v306
    %v310 = vmul.f32 1.0, %v309
    %v311 = vtanh.pop %v298
    %v312 = vmul.f32 %v308, 0.0
    %314 = vrot.lane.b32.xlu0 %v311, 64
    %v315 = vpop.permute.xlu0 %314
    %v317 = vmul.f32 %v308, %v315
    %319 = vrot.lane.b32.xlu0 %v317, 64
    %v320 = vpop.permute.xlu0 %319
    %v322 = vadd.f32 %v312, %v320
    %v323 = vtanh.pop %v322
    %325 = vrot.lane.b32.xlu0 %v323, 64
    %v326 = vpop.permute.xlu0 %325
    %v328 = vmul.f32 %v310, %v326
    %s329 = smul.u32 1, 2
    %s330 = smul.addr %s329, 8
    %s331 = scalar_lea.vmem [#allocation2], %s330
    %v332 = vld [vmem:[%s331] sm:$0xff]
    %v333 = vld [vmem:[%s331 + $0x8] sm:$0xff]
    %vm334 = vcmask 523264
    %v336 = vsel %vm334, %v328, 0
    %338 = vmatprep.subr.mxu0 %v238
    %339 = vmatpush1.msra.mxu0 %v237
    %340 = vmatprep.subr.mxu0 %v240
    %341 = vmatpush1.msra.mxu0 %v239
    %342 = vmatprep.subr.mxu0 %v242
    %343 = vmatpush1.msra.mxu0 %v241
    %344 = vmatprep.subr.mxu0 %v244
    %345 = vmatpush1.msra.mxu0 %v243
    %346 = vmatprep.subr.mxu0 %v246
    %347 = vmatpush1.msra.mxu0 %v245
    %348 = vmatprep.subr.mxu0 %v248
    %349 = vmatpush1.msra.mxu0 %v247
    %350 = vmatprep.subr.mxu0 %v250
    %351 = vmatpush1.msra.mxu0 %v249
    %352 = vmatprep.subr.mxu0 %v252
    %353 = vmatpush1.msra.mxu0 %v251
    %354 = vmatprep.subr.mxu0 0.0
    %355 = vmatpush1.msra.mxu0 0.0
    %356 = vmatprep.subr.mxu0 0.0
    %357 = vmatpush1.msra.mxu0 0.0
    %358 = vmatprep.subr.mxu0 0.0
    %359 = vmatpush1.msra.mxu0 0.0
    %360 = vmatprep.subr.mxu0 0.0
    %361 = vmatpush1.msra.mxu0 0.0
    %362 = vmatprep.subr.mxu0 0.0
    %363 = vmatpush1.msra.mxu0 0.0
    %364 = vmatprep.subr.mxu0 0.0
    %365 = vmatpush1.msra.mxu0 0.0
    %366 = vmatprep.subr.mxu0 0.0
    %367 = vmatpush1.msra.mxu0 0.0
    %368 = vmatprep.subr.mxu0 0.0
    %369 = vmatpush1.msra.mxu0 0.0
    %370 = vmatprep.subr.mxu0 0.0
    %371 = vmatpush1.msra.mxu0 0.0
    %372 = vmatprep.subr.mxu0 0.0
    %373 = vmatpush1.msra.mxu0 0.0
    %374 = vmatprep.subr.mxu0 0.0
    %375 = vmatpush1.msra.mxu0 0.0
    %376 = vmatprep.subr.mxu0 0.0
    %377 = vmatpush1.msra.mxu0 0.0
    %378 = vmatprep.subr.mxu0 0.0
    %379 = vmatpush1.msra.mxu0 0.0
    %380 = vmatprep.subr.mxu0 0.0
    %381 = vmatpush1.msra.mxu0 0.0
    %382 = vmatprep.subr.mxu0 0.0
    %383 = vmatpush1.msra.mxu0 0.0
    %384 = vmatprep.subr.mxu0 0.0
    %385 = vmatpush1.msra.mxu0 0.0
    %386 = vmatprep.subr.mxu0 0.0
    %387 = vmatpush1.msra.mxu0 0.0
    %388 = vmatprep.subr.mxu0 0.0
    %389 = vmatpush1.msra.mxu0 0.0
    %390 = vmatprep.subr.mxu0 0.0
    %391 = vmatpush1.msra.mxu0 0.0
    %392 = vmatprep.subr.mxu0 0.0
    %393 = vmatpush1.msra.mxu0 0.0
    %394 = vmatprep.subr.mxu0 0.0
    %395 = vmatpush1.msra.mxu0 0.0
    %396 = vmatprep.subr.mxu0 0.0
    %397 = vmatpush1.msra.mxu0 0.0
    %398 = vmatprep.subr.mxu0 0.0
    %399 = vmatpush1.msra.mxu0 0.0
    %400 = vmatprep.subr.mxu0 0.0
    %401 = vmatpush1.msra.mxu0 0.0
    %402 = vmatprep.mubr.f32.mxu0 0.0
    %403 = vmatmul.mubr.f32.gmra.mrb[0].mxu0 %v336
    %v404 = vpop.f32.mrb[0].mxu0
    %v405 = vadd.f32 0.0, %v404
    %v406 = vpop.f32.mrb[0].mxu0
    %v407 = vadd.f32 0.0, %v406
    %408 = vdwg.mxu0
    %v409 = vadd.f32 %v332, %v405
    %v410 = vadd.f32 %v333, %v407
    %v411 = vsel %vm334, %v328, 0.0
    %412 = vmatprep.subr.mxu0 %v254
    %413 = vmatpush1.msra.mxu0 %v253
    %414 = vmatprep.subr.mxu0 %v256
    %415 = vmatpush1.msra.mxu0 %v255
    %416 = vmatprep.subr.mxu0 %v258
    %417 = vmatpush1.msra.mxu0 %v257
    %418 = vmatprep.subr.mxu0 %v260
    %419 = vmatpush1.msra.mxu0 %v259
    %420 = vmatprep.subr.mxu0 %v262
    %421 = vmatpush1.msra.mxu0 %v261
    %422 = vmatprep.subr.mxu0 %v264
    %423 = vmatpush1.msra.mxu0 %v263
    %424 = vmatprep.subr.mxu0 %v266
    %425 = vmatpush1.msra.mxu0 %v265
    %426 = vmatprep.subr.mxu0 %v268
    %427 = vmatpush1.msra.mxu0 %v267
    %428 = vmatprep.subr.mxu0 %v270
    %429 = vmatpush1.msra.mxu0 %v269
    %430 = vmatprep.subr.mxu0 %v272
    %431 = vmatpush1.msra.mxu0 %v271
    %432 = vmatprep.subr.mxu0 %v274
    %433 = vmatpush1.msra.mxu0 %v273
    %434 = vmatprep.subr.mxu0 %v276
    %435 = vmatpush1.msra.mxu0 %v275
    %436 = vmatprep.subr.mxu0 %v278
    %437 = vmatpush1.msra.mxu0 %v277
    %438 = vmatprep.subr.mxu0 %v280
    %439 = vmatpush1.msra.mxu0 %v279
    %440 = vmatprep.subr.mxu0 %v282
    %441 = vmatpush1.msra.mxu0 %v281
    %442 = vmatprep.subr.mxu0 %v284
    %443 = vmatpush1.msra.mxu0 %v283
    %444 = vmatprep.subr.mxu0 0.0
    %445 = vmatpush1.msra.mxu0 0.0
    %446 = vmatprep.subr.mxu0 0.0
    %447 = vmatpush1.msra.mxu0 0.0
    %448 = vmatprep.subr.mxu0 0.0
    %449 = vmatpush1.msra.mxu0 0.0
    %450 = vmatprep.subr.mxu0 0.0
    %451 = vmatpush1.msra.mxu0 0.0
    %452 = vmatprep.subr.mxu0 0.0
    %453 = vmatpush1.msra.mxu0 0.0
    %454 = vmatprep.subr.mxu0 0.0
    %455 = vmatpush1.msra.mxu0 0.0
    %456 = vmatprep.subr.mxu0 0.0
    %457 = vmatpush1.msra.mxu0 0.0
    %458 = vmatprep.subr.mxu0 0.0
    %459 = vmatpush1.msra.mxu0 0.0
    %460 = vmatprep.subr.mxu0 0.0
    %461 = vmatpush1.msra.mxu0 0.0
    %462 = vmatprep.subr.mxu0 0.0
    %463 = vmatpush1.msra.mxu0 0.0
    %464 = vmatprep.subr.mxu0 0.0
    %465 = vmatpush1.msra.mxu0 0.0
    %466 = vmatprep.subr.mxu0 0.0
    %467 = vmatpush1.msra.mxu0 0.0
    %468 = vmatprep.subr.mxu0 0.0
    %469 = vmatpush1.msra.mxu0 0.0
    %470 = vmatprep.subr.mxu0 0.0
    %471 = vmatpush1.msra.mxu0 0.0
    %472 = vmatprep.subr.mxu0 0.0
    %473 = vmatpush1.msra.mxu0 0.0
    %474 = vmatprep.subr.mxu0 0.0
    %475 = vmatpush1.msra.mxu0 0.0
    %476 = vmatprep.mubr.f32.mxu0 0.0
    %477 = vmatmul.mubr.f32.gmra.mrb[0].mxu0 %v411
    %v478 = vpop.f32.mrb[0].mxu0
    %v479 = vadd.f32 %v290, %v478
    %v480 = vpop.f32.mrb[0].mxu0
    %v481 = vadd.f32 %v294, %v480
    %482 = vdwg.mxu0
    %v483 = vxor.u32 %v409, 2147483648
    %v484 = vxor.u32 %v410, 2147483648
    %v485 = vmul.f32 %v483, 1.442695
    %v486 = vpow.pop %v485
    %v487 = vmul.f32 %v484, 1.442695
    %v488 = vpow.pop %v487
    %v489 = vadd.f32 %v486, 1.0
    %v490 = vadd.f32 %v488, 1.0
    %v491 = vrcp.pop %v489
    %v492 = vmul.f32 1.0, %v491
    %v493 = vrcp.pop %v490
    %v494 = vmul.f32 1.0, %v493
    %v495 = vtanh.pop %v410
    %v496 = vmul.f32 %v492, %v322
    %498 = vrot.lane.b32.xlu0 %v495, 64
    %v499 = vpop.permute.xlu0 %498
    %v501 = vmul.f32 %v492, %v499
    %503 = vrot.lane.b32.xlu0 %v501, 64
    %v504 = vpop.permute.xlu0 %503
    %v506 = vadd.f32 %v496, %v504
    %v507 = vtanh.pop %v506
    %509 = vrot.lane.b32.xlu0 %v507, 64
    %v510 = vpop.permute.xlu0 %509
    %v512 = vmul.f32 %v494, %v510
    %v513 = vxor.u32 %v479, 2147483648
    %v514 = vxor.u32 %v481, 2147483648
    %v515 = vmul.f32 %v513, 1.442695
    %v516 = vpow.pop %v515
    %v517 = vmul.f32 %v514, 1.442695
    %v518 = vpow.pop %v517
    %v519 = vadd.f32 %v516, 1.0
    %v520 = vadd.f32 %v518, 1.0
    %v521 = vrcp.pop %v519
    %v522 = vmul.f32 1.0, %v521
    %v523 = vrcp.pop %v520
    %v524 = vmul.f32 1.0, %v523
    %v525 = vtanh.pop %v481
    %v526 = vmul.f32 %v522, 0.0
    %528 = vrot.lane.b32.xlu0 %v525, 64
    %v529 = vpop.permute.xlu0 %528
    %v531 = vmul.f32 %v522, %v529
    %533 = vrot.lane.b32.xlu0 %v531, 64
    %v534 = vpop.permute.xlu0 %533
    %v536 = vadd.f32 %v526, %v534
    %v537 = vtanh.pop %v536
    %539 = vrot.lane.b32.xlu0 %v537, 64
    %v540 = vpop.permute.xlu0 %539
    %v542 = vmul.f32 %v524, %v540
    %s543 = smul.u32 2, 2
    %s544 = smul.addr %s543, 8
    %s545 = scalar_lea.vmem [#allocation2], %s544
    %v546 = vld [vmem:[%s545] sm:$0xff]
    %v547 = vld [vmem:[%s545 + $0x8] sm:$0xff]
    %v549 = vsel %vm334, %v512, 0
    %551 = vmatprep.subr.mxu0 %v238
    %552 = vmatpush1.msra.mxu0 %v237
    %553 = vmatprep.subr.mxu0 %v240
    %554 = vmatpush1.msra.mxu0 %v239
    %555 = vmatprep.subr.mxu0 %v242
    %556 = vmatpush1.msra.mxu0 %v241
    %557 = vmatprep.subr.mxu0 %v244
    %558 = vmatpush1.msra.mxu0 %v243
    %559 = vmatprep.subr.mxu0 %v246
    %560 = vmatpush1.msra.mxu0 %v245
    %561 = vmatprep.subr.mxu0 %v248
    %562 = vmatpush1.msra.mxu0 %v247
    %563 = vmatprep.subr.mxu0 %v250
    %564 = vmatpush1.msra.mxu0 %v249
    %565 = vmatprep.subr.mxu0 %v252
    %566 = vmatpush1.msra.mxu0 %v251
    %567 = vmatprep.subr.mxu0 0.0
    %568 = vmatpush1.msra.mxu0 0.0
    %569 = vmatprep.subr.mxu0 0.0
    %570 = vmatpush1.msra.mxu0 0.0
    %571 = vmatprep.subr.mxu0 0.0
    %572 = vmatpush1.msra.mxu0 0.0
    %573 = vmatprep.subr.mxu0 0.0
    %574 = vmatpush1.msra.mxu0 0.0
    %575 = vmatprep.subr.mxu0 0.0
    %576 = vmatpush1.msra.mxu0 0.0
    %577 = vmatprep.subr.mxu0 0.0
    %578 = vmatpush1.msra.mxu0 0.0
    %579 = vmatprep.subr.mxu0 0.0
    %580 = vmatpush1.msra.mxu0 0.0
    %581 = vmatprep.subr.mxu0 0.0
    %582 = vmatpush1.msra.mxu0 0.0
    %583 = vmatprep.subr.mxu0 0.0
    %584 = vmatpush1.msra.mxu0 0.0
    %585 = vmatprep.subr.mxu0 0.0
    %586 = vmatpush1.msra.mxu0 0.0
    %587 = vmatprep.subr.mxu0 0.0
    %588 = vmatpush1.msra.mxu0 0.0
    %589 = vmatprep.subr.mxu0 0.0
    %590 = vmatpush1.msra.mxu0 0.0
    %591 = vmatprep.subr.mxu0 0.0
    %592 = vmatpush1.msra.mxu0 0.0
    %593 = vmatprep.subr.mxu0 0.0
    %594 = vmatpush1.msra.mxu0 0.0
    %595 = vmatprep.subr.mxu0 0.0
    %596 = vmatpush1.msra.mxu0 0.0
    %597 = vmatprep.subr.mxu0 0.0
    %598 = vmatpush1.msra.mxu0 0.0
    %599 = vmatprep.subr.mxu0 0.0
    %600 = vmatpush1.msra.mxu0 0.0
    %601 = vmatprep.subr.mxu0 0.0
    %602 = vmatpush1.msra.mxu0 0.0
    %603 = vmatprep.subr.mxu0 0.0
    %604 = vmatpush1.msra.mxu0 0.0
    %605 = vmatprep.subr.mxu0 0.0
    %606 = vmatpush1.msra.mxu0 0.0
    %607 = vmatprep.subr.mxu0 0.0
    %608 = vmatpush1.msra.mxu0 0.0
    %609 = vmatprep.subr.mxu0 0.0
    %610 = vmatpush1.msra.mxu0 0.0
    %611 = vmatprep.subr.mxu0 0.0
    %612 = vmatpush1.msra.mxu0 0.0
    %613 = vmatprep.subr.mxu0 0.0
    %614 = vmatpush1.msra.mxu0 0.0
    %615 = vmatprep.mubr.f32.mxu0 0.0
    %616 = vmatmul.mubr.f32.gmra.mrb[0].mxu0 %v549
    %v617 = vpop.f32.mrb[0].mxu0
    %v618 = vadd.f32 0.0, %v617
    %v619 = vpop.f32.mrb[0].mxu0
    %v620 = vadd.f32 0.0, %v619
    %621 = vdwg.mxu0
    %v622 = vadd.f32 %v546, %v618
    %v623 = vadd.f32 %v547, %v620
    %625 = vrot.lane.b32.xlu0 %v542, 64
    %v626 = vpop.permute.xlu0 %625
    %v628 = vsel %vm334, %v512, %v626
    %629 = vmatprep.subr.mxu0 %v254
    %630 = vmatpush1.msra.mxu0 %v253
    %631 = vmatprep.subr.mxu0 %v256
    %632 = vmatpush1.msra.mxu0 %v255
    %633 = vmatprep.subr.mxu0 %v258
    %634 = vmatpush1.msra.mxu0 %v257
    %635 = vmatprep.subr.mxu0 %v260
    %636 = vmatpush1.msra.mxu0 %v259
    %637 = vmatprep.subr.mxu0 %v262
    %638 = vmatpush1.msra.mxu0 %v261
    %639 = vmatprep.subr.mxu0 %v264
    %640 = vmatpush1.msra.mxu0 %v263
    %641 = vmatprep.subr.mxu0 %v266
    %642 = vmatpush1.msra.mxu0 %v265
    %643 = vmatprep.subr.mxu0 %v268
    %644 = vmatpush1.msra.mxu0 %v267
    %645 = vmatprep.subr.mxu0 %v270
    %646 = vmatpush1.msra.mxu0 %v269
    %647 = vmatprep.subr.mxu0 %v272
    %648 = vmatpush1.msra.mxu0 %v271
    %649 = vmatprep.subr.mxu0 %v274
    %650 = vmatpush1.msra.mxu0 %v273
    %651 = vmatprep.subr.mxu0 %v276
    %652 = vmatpush1.msra.mxu0 %v275
    %653 = vmatprep.subr.mxu0 %v278
    %654 = vmatpush1.msra.mxu0 %v277
    %655 = vmatprep.subr.mxu0 %v280
    %656 = vmatpush1.msra.mxu0 %v279
    %657 = vmatprep.subr.mxu0 %v282
    %658 = vmatpush1.msra.mxu0 %v281
    %659 = vmatprep.subr.mxu0 %v284
    %660 = vmatpush1.msra.mxu0 %v283
    %661 = vmatprep.subr.mxu0 0.0
    %662 = vmatpush1.msra.mxu0 0.0
    %663 = vmatprep.subr.mxu0 0.0
    %664 = vmatpush1.msra.mxu0 0.0
    %665 = vmatprep.subr.mxu0 0.0
    %666 = vmatpush1.msra.mxu0 0.0
    %667 = vmatprep.subr.mxu0 0.0
    %668 = vmatpush1.msra.mxu0 0.0
    %669 = vmatprep.subr.mxu0 0.0
    %670 = vmatpush1.msra.mxu0 0.0
    %671 = vmatprep.subr.mxu0 0.0
    %672 = vmatpush1.msra.mxu0 0.0
    %673 = vmatprep.subr.mxu0 0.0
    %674 = vmatpush1.msra.mxu0 0.0
    %675 = vmatprep.subr.mxu0 0.0
    %676 = vmatpush1.msra.mxu0 0.0
    %677 = vmatprep.subr.mxu0 0.0
    %678 = vmatpush1.msra.mxu0 0.0
    %679 = vmatprep.subr.mxu0 0.0
    %680 = vmatpush1.msra.mxu0 0.0
    %681 = vmatprep.subr.mxu0 0.0
    %682 = vmatpush1.msra.mxu0 0.0
    %683 = vmatprep.subr.mxu0 0.0
    %684 = vmatpush1.msra.mxu0 0.0
    %685 = vmatprep.subr.mxu0 0.0
    %686 = vmatpush1.msra.mxu0 0.0
    %687 = vmatprep.subr.mxu0 0.0
    %688 = vmatpush1.msra.mxu0 0.0
    %689 = vmatprep.subr.mxu0 0.0
    %690 = vmatpush1.msra.mxu0 0.0
    %691 = vmatprep.subr.mxu0 0.0
    %692 = vmatpush1.msra.mxu0 0.0
    %693 = vmatprep.mubr.f32.mxu0 0.0
    %694 = vmatmul.mubr.f32.gmra.mrb[0].mxu0 %v628
    %v695 = vpop.f32.mrb[0].mxu0
    %v696 = vadd.f32 %v290, %v695
    %v697 = vpop.f32.mrb[0].mxu0
    %v698 = vadd.f32 %v294, %v697
    %699 = vdwg.mxu0
    %v700 = vxor.u32 %v622, 2147483648
    %v701 = vxor.u32 %v623, 2147483648
    %v702 = vmul.f32 %v700, 1.442695
    %v703 = vpow.pop %v702
    %v704 = vmul.f32 %v701, 1.442695
    %v705 = vpow.pop %v704
    %v706 = vadd.f32 %v703, 1.0
    %v707 = vadd.f32 %v705, 1.0
    %v708 = vrcp.pop %v706
    %v709 = vmul.f32 1.0, %v708
    %v710 = vrcp.pop %v707
    %v711 = vmul.f32 1.0, %v710
    %v712 = vtanh.pop %v623
    %v713 = vmul.f32 %v709, %v506
    %715 = vrot.lane.b32.xlu0 %v712, 64
    %v716 = vpop.permute.xlu0 %715
    %v718 = vmul.f32 %v709, %v716
    %720 = vrot.lane.b32.xlu0 %v718, 64
    %v721 = vpop.permute.xlu0 %720
    %v723 = vadd.f32 %v713, %v721
    %v724 = vtanh.pop %v723
    %726 = vrot.lane.b32.xlu0 %v724, 64
    %v727 = vpop.permute.xlu0 %726
    %v729 = vmul.f32 %v711, %v727
    %v730 = vxor.u32 %v696, 2147483648
    %v731 = vxor.u32 %v698, 2147483648
    %v732 = vmul.f32 %v730, 1.442695
    %v733 = vpow.pop %v732
    %v734 = vmul.f32 %v731, 1.442695
    %v735 = vpow.pop %v734
    %v736 = vadd.f32 %v733, 1.0
    %v737 = vadd.f32 %v735, 1.0
    %v738 = vrcp.pop %v736
    %v739 = vmul.f32 1.0, %v738
    %v740 = vrcp.pop %v737
    %v741 = vmul.f32 1.0, %v740
    %v742 = vtanh.pop %v698
    %v743 = vmul.f32 %v739, %v536
    %745 = vrot.lane.b32.xlu0 %v742, 64
    %v746 = vpop.permute.xlu0 %745
    %v748 = vmul.f32 %v739, %v746
    %750 = vrot.lane.b32.xlu0 %v748, 64
    %v751 = vpop.permute.xlu0 %750
    %v753 = vadd.f32 %v743, %v751
    %v754 = vtanh.pop %v753
    %756 = vrot.lane.b32.xlu0 %v754, 64
    %v757 = vpop.permute.xlu0 %756
    %v759 = vmul.f32 %v741, %v757
    %s760 = smul.u32 3, 2
    %s761 = smul.addr %s760, 8
    %s762 = scalar_lea.vmem [#allocation2], %s761
    %v763 = vld [vmem:[%s762] sm:$0xff]
    %v764 = vld [vmem:[%s762 + $0x8] sm:$0xff]
    %v766 = vsel %vm334, %v729, 0
    %768 = vmatprep.subr.mxu0 %v238
    %769 = vmatpush1.msra.mxu0 %v237
    %770 = vmatprep.subr.mxu0 %v240
    %771 = vmatpush1.msra.mxu0 %v239
    %772 = vmatprep.subr.mxu0 %v242
    %773 = vmatpush1.msra.mxu0 %v241
    %774 = vmatprep.subr.mxu0 %v244
    %775 = vmatpush1.msra.mxu0 %v243
    %776 = vmatprep.subr.mxu0 %v246
    %777 = vmatpush1.msra.mxu0 %v245
    %778 = vmatprep.subr.mxu0 %v248
    %779 = vmatpush1.msra.mxu0 %v247
    %780 = vmatprep.subr.mxu0 %v250
    %781 = vmatpush1.msra.mxu0 %v249
    %782 = vmatprep.subr.mxu0 %v252
    %783 = vmatpush1.msra.mxu0 %v251
    %784 = vmatprep.subr.mxu0 0.0
    %785 = vmatpush1.msra.mxu0 0.0
    %786 = vmatprep.subr.mxu0 0.0
    %787 = vmatpush1.msra.mxu0 0.0
    %788 = vmatprep.subr.mxu0 0.0
    %789 = vmatpush1.msra.mxu0 0.0
    %790 = vmatprep.subr.mxu0 0.0
    %791 = vmatpush1.msra.mxu0 0.0
    %792 = vmatprep.subr.mxu0 0.0
    %793 = vmatpush1.msra.mxu0 0.0
    %794 = vmatprep.subr.mxu0 0.0
    %795 = vmatpush1.msra.mxu0 0.0
    %796 = vmatprep.subr.mxu0 0.0
    %797 = vmatpush1.msra.mxu0 0.0
    %798 = vmatprep.subr.mxu0 0.0
    %799 = vmatpush1.msra.mxu0 0.0
    %800 = vmatprep.subr.mxu0 0.0
    %801 = vmatpush1.msra.mxu0 0.0
    %802 = vmatprep.subr.mxu0 0.0
    %803 = vmatpush1.msra.mxu0 0.0
    %804 = vmatprep.subr.mxu0 0.0
    %805 = vmatpush1.msra.mxu0 0.0
    %806 = vmatprep.subr.mxu0 0.0
    %807 = vmatpush1.msra.mxu0 0.0
    %808 = vmatprep.subr.mxu0 0.0
    %809 = vmatpush1.msra.mxu0 0.0
    %810 = vmatprep.subr.mxu0 0.0
    %811 = vmatpush1.msra.mxu0 0.0
    %812 = vmatprep.subr.mxu0 0.0
    %813 = vmatpush1.msra.mxu0 0.0
    %814 = vmatprep.subr.mxu0 0.0
    %815 = vmatpush1.msra.mxu0 0.0
    %816 = vmatprep.subr.mxu0 0.0
    %817 = vmatpush1.msra.mxu0 0.0
    %818 = vmatprep.subr.mxu0 0.0
    %819 = vmatpush1.msra.mxu0 0.0
    %820 = vmatprep.subr.mxu0 0.0
    %821 = vmatpush1.msra.mxu0 0.0
    %822 = vmatprep.subr.mxu0 0.0
    %823 = vmatpush1.msra.mxu0 0.0
    %824 = vmatprep.subr.mxu0 0.0
    %825 = vmatpush1.msra.mxu0 0.0
    %826 = vmatprep.subr.mxu0 0.0
    %827 = vmatpush1.msra.mxu0 0.0
    %828 = vmatprep.subr.mxu0 0.0
    %829 = vmatpush1.msra.mxu0 0.0
    %830 = vmatprep.subr.mxu0 0.0
    %831 = vmatpush1.msra.mxu0 0.0
    %832 = vmatprep.mubr.f32.mxu0 0.0
    %833 = vmatmul.mubr.f32.gmra.mrb[0].mxu0 %v766
    %v834 = vpop.f32.mrb[0].mxu0
    %v835 = vadd.f32 0.0, %v834
    %v836 = vpop.f32.mrb[0].mxu0
    %v837 = vadd.f32 0.0, %v836
    %838 = vdwg.mxu0
    %v839 = vadd.f32 %v763, %v835
    %v840 = vadd.f32 %v764, %v837
    %842 = vrot.lane.b32.xlu0 %v759, 64
    %v843 = vpop.permute.xlu0 %842
    %v845 = vsel %vm334, %v729, %v843
    %846 = vmatprep.subr.mxu0 %v254
    %847 = vmatpush1.msra.mxu0 %v253
    %848 = vmatprep.subr.mxu0 %v256
    %849 = vmatpush1.msra.mxu0 %v255
    %850 = vmatprep.subr.mxu0 %v258
    %851 = vmatpush1.msra.mxu0 %v257
    %852 = vmatprep.subr.mxu0 %v260
    %853 = vmatpush1.msra.mxu0 %v259
    %854 = vmatprep.subr.mxu0 %v262
    %855 = vmatpush1.msra.mxu0 %v261
    %856 = vmatprep.subr.mxu0 %v264
    %857 = vmatpush1.msra.mxu0 %v263
    %858 = vmatprep.subr.mxu0 %v266
    %859 = vmatpush1.msra.mxu0 %v265
    %860 = vmatprep.subr.mxu0 %v268
    %861 = vmatpush1.msra.mxu0 %v267
    %862 = vmatprep.subr.mxu0 %v270
    %863 = vmatpush1.msra.mxu0 %v269
    %864 = vmatprep.subr.mxu0 %v272
    %865 = vmatpush1.msra.mxu0 %v271
    %866 = vmatprep.subr.mxu0 %v274
    %867 = vmatpush1.msra.mxu0 %v273
    %868 = vmatprep.subr.mxu0 %v276
    %869 = vmatpush1.msra.mxu0 %v275
    %870 = vmatprep.subr.mxu0 %v278
    %871 = vmatpush1.msra.mxu0 %v277
    %872 = vmatprep.subr.mxu0 %v280
    %873 = vmatpush1.msra.mxu0 %v279
    %874 = vmatprep.subr.mxu0 %v282
    %875 = vmatpush1.msra.mxu0 %v281
    %876 = vmatprep.subr.mxu0 %v284
    %877 = vmatpush1.msra.mxu0 %v283
    %878 = vmatprep.subr.mxu0 0.0
    %879 = vmatpush1.msra.mxu0 0.0
    %880 = vmatprep.subr.mxu0 0.0
    %881 = vmatpush1.msra.mxu0 0.0
    %882 = vmatprep.subr.mxu0 0.0
    %883 = vmatpush1.msra.mxu0 0.0
    %884 = vmatprep.subr.mxu0 0.0
    %885 = vmatpush1.msra.mxu0 0.0
    %886 = vmatprep.subr.mxu0 0.0
    %887 = vmatpush1.msra.mxu0 0.0
    %888 = vmatprep.subr.mxu0 0.0
    %889 = vmatpush1.msra.mxu0 0.0
    %890 = vmatprep.subr.mxu0 0.0
    %891 = vmatpush1.msra.mxu0 0.0
    %892 = vmatprep.subr.mxu0 0.0
    %893 = vmatpush1.msra.mxu0 0.0
    %894 = vmatprep.subr.mxu0 0.0
    %895 = vmatpush1.msra.mxu0 0.0
    %896 = vmatprep.subr.mxu0 0.0
    %897 = vmatpush1.msra.mxu0 0.0
    %898 = vmatprep.subr.mxu0 0.0
    %899 = vmatpush1.msra.mxu0 0.0
    %900 = vmatprep.subr.mxu0 0.0
    %901 = vmatpush1.msra.mxu0 0.0
    %902 = vmatprep.subr.mxu0 0.0
    %903 = vmatpush1.msra.mxu0 0.0
    %904 = vmatprep.subr.mxu0 0.0
    %905 = vmatpush1.msra.mxu0 0.0
    %906 = vmatprep.subr.mxu0 0.0
    %907 = vmatpush1.msra.mxu0 0.0
    %908 = vmatprep.subr.mxu0 0.0
    %909 = vmatpush1.msra.mxu0 0.0
    %910 = vmatprep.mubr.f32.mxu0 0.0
    %911 = vmatmul.mubr.f32.gmra.mrb[0].mxu0 %v845
    %v912 = vpop.f32.mrb[0].mxu0
    %v913 = vadd.f32 %v290, %v912
    %v914 = vpop.f32.mrb[0].mxu0
    %v915 = vadd.f32 %v294, %v914
    %916 = vdwg.mxu0
    %v917 = vxor.u32 %v839, 2147483648
    %v918 = vxor.u32 %v840, 2147483648
    %v919 = vmul.f32 %v917, 1.442695
    %v920 = vpow.pop %v919
    %v921 = vmul.f32 %v918, 1.442695
    %v922 = vpow.pop %v921
    %v923 = vadd.f32 %v920, 1.0
    %v924 = vadd.f32 %v922, 1.0
    %v925 = vrcp.pop %v923
    %v926 = vmul.f32 1.0, %v925
    %v927 = vrcp.pop %v924
    %v928 = vmul.f32 1.0, %v927
    %v929 = vtanh.pop %v840
    %v930 = vmul.f32 %v926, %v723
    %932 = vrot.lane.b32.xlu0 %v929, 64
    %v933 = vpop.permute.xlu0 %932
    %v935 = vmul.f32 %v926, %v933
    %937 = vrot.lane.b32.xlu0 %v935, 64
    %v938 = vpop.permute.xlu0 %937
    %v940 = vadd.f32 %v930, %v938
    %v941 = vtanh.pop %v940
    %943 = vrot.lane.b32.xlu0 %v941, 64
    %v944 = vpop.permute.xlu0 %943
    %v946 = vmul.f32 %v928, %v944
    %v947 = vxor.u32 %v913, 2147483648
    %v948 = vxor.u32 %v915, 2147483648
    %v949 = vmul.f32 %v947, 1.442695
    %v950 = vpow.pop %v949
    %v951 = vmul.f32 %v948, 1.442695
    %v952 = vpow.pop %v951
    %v953 = vadd.f32 %v950, 1.0
    %v954 = vadd.f32 %v952, 1.0
    %v955 = vrcp.pop %v953
    %v956 = vmul.f32 1.0, %v955
    %v957 = vrcp.pop %v954
    %v958 = vmul.f32 1.0, %v957
    %v959 = vtanh.pop %v915
    %v960 = vmul.f32 %v956, %v753
    %962 = vrot.lane.b32.xlu0 %v959, 64
    %v963 = vpop.permute.xlu0 %962
    %v965 = vmul.f32 %v956, %v963
    %967 = vrot.lane.b32.xlu0 %v965, 64
    %v968 = vpop.permute.xlu0 %967
    %v970 = vadd.f32 %v960, %v968
    %v971 = vtanh.pop %v970
    %973 = vrot.lane.b32.xlu0 %v971, 64
    %v974 = vpop.permute.xlu0 %973
    %v976 = vmul.f32 %v958, %v974
    %s977 = smul.u32 4, 2
    %s978 = smul.addr %s977, 8
    %s979 = scalar_lea.vmem [#allocation2], %s978
    %v980 = vld [vmem:[%s979] sm:$0xff]
    %v981 = vld [vmem:[%s979 + $0x8] sm:$0xff]
    %v983 = vsel %vm334, %v946, 0
    %985 = vmatprep.subr.mxu0 %v238
    %986 = vmatpush1.msra.mxu0 %v237
    %987 = vmatprep.subr.mxu0 %v240
    %988 = vmatpush1.msra.mxu0 %v239
    %989 = vmatprep.subr.mxu0 %v242
    %990 = vmatpush1.msra.mxu0 %v241
    %991 = vmatprep.subr.mxu0 %v244
    %992 = vmatpush1.msra.mxu0 %v243
    %993 = vmatprep.subr.mxu0 %v246
    %994 = vmatpush1.msra.mxu0 %v245
    %995 = vmatprep.subr.mxu0 %v248
    %996 = vmatpush1.msra.mxu0 %v247
    %997 = vmatprep.subr.mxu0 %v250
    %998 = vmatpush1.msra.mxu0 %v249
    %999 = vmatprep.subr.mxu0 %v252
    %1000 = vmatpush1.msra.mxu0 %v251
    %1001 = vmatprep.subr.mxu0 0.0
    %1002 = vmatpush1.msra.mxu0 0.0
    %1003 = vmatprep.subr.mxu0 0.0
    %1004 = vmatpush1.msra.mxu0 0.0
    %1005 = vmatprep.subr.mxu0 0.0
    %1006 = vmatpush1.msra.mxu0 0.0
    %1007 = vmatprep.subr.mxu0 0.0
    %1008 = vmatpush1.msra.mxu0 0.0
    %1009 = vmatprep.subr.mxu0 0.0
    %1010 = vmatpush1.msra.mxu0 0.0
    %1011 = vmatprep.subr.mxu0 0.0
    %1012 = vmatpush1.msra.mxu0 0.0
    %1013 = vmatprep.subr.mxu0 0.0
    %1014 = vmatpush1.msra.mxu0 0.0
    %1015 = vmatprep.subr.mxu0 0.0
    %1016 = vmatpush1.msra.mxu0 0.0
    %1017 = vmatprep.subr.mxu0 0.0
    %1018 = vmatpush1.msra.mxu0 0.0
    %1019 = vmatprep.subr.mxu0 0.0
    %1020 = vmatpush1.msra.mxu0 0.0
    %1021 = vmatprep.subr.mxu0 0.0
    %1022 = vmatpush1.msra.mxu0 0.0
    %1023 = vmatprep.subr.mxu0 0.0
    %1024 = vmatpush1.msra.mxu0 0.0
    %1025 = vmatprep.subr.mxu0 0.0
    %1026 = vmatpush1.msra.mxu0 0.0
    %1027 = vmatprep.subr.mxu0 0.0
    %1028 = vmatpush1.msra.mxu0 0.0
    %1029 = vmatprep.subr.mxu0 0.0
    %1030 = vmatpush1.msra.mxu0 0.0
    %1031 = vmatprep.subr.mxu0 0.0
    %1032 = vmatpush1.msra.mxu0 0.0
    %1033 = vmatprep.subr.mxu0 0.0
    %1034 = vmatpush1.msra.mxu0 0.0
    %1035 = vmatprep.subr.mxu0 0.0
    %1036 = vmatpush1.msra.mxu0 0.0
    %1037 = vmatprep.subr.mxu0 0.0
    %1038 = vmatpush1.msra.mxu0 0.0
    %1039 = vmatprep.subr.mxu0 0.0
    %1040 = vmatpush1.msra.mxu0 0.0
    %1041 = vmatprep.subr.mxu0 0.0
    %1042 = vmatpush1.msra.mxu0 0.0
    %1043 = vmatprep.subr.mxu0 0.0
    %1044 = vmatpush1.msra.mxu0 0.0
    %1045 = vmatprep.subr.mxu0 0.0
    %1046 = vmatpush1.msra.mxu0 0.0
    %1047 = vmatprep.subr.mxu0 0.0
    %1048 = vmatpush1.msra.mxu0 0.0
    %1049 = vmatprep.mubr.f32.mxu0 0.0
    %1050 = vmatmul.mubr.f32.gmra.mrb[0].mxu0 %v983
    %v1051 = vpop.f32.mrb[0].mxu0
    %v1052 = vadd.f32 0.0, %v1051
    %v1053 = vpop.f32.mrb[0].mxu0
    %v1054 = vadd.f32 0.0, %v1053
    %1055 = vdwg.mxu0
    %v1056 = vadd.f32 %v980, %v1052
    %v1057 = vadd.f32 %v981, %v1054
    %1059 = vrot.lane.b32.xlu0 %v976, 64
    %v1060 = vpop.permute.xlu0 %1059
    %v1062 = vsel %vm334, %v946, %v1060
    %1063 = vmatprep.subr.mxu0 %v254
    %1064 = vmatpush1.msra.mxu0 %v253
    %1065 = vmatprep.subr.mxu0 %v256
    %1066 = vmatpush1.msra.mxu0 %v255
    %1067 = vmatprep.subr.mxu0 %v258
    %1068 = vmatpush1.msra.mxu0 %v257
    %1069 = vmatprep.subr.mxu0 %v260
    %1070 = vmatpush1.msra.mxu0 %v259
    %1071 = vmatprep.subr.mxu0 %v262
    %1072 = vmatpush1.msra.mxu0 %v261
    %1073 = vmatprep.subr.mxu0 %v264
    %1074 = vmatpush1.msra.mxu0 %v263
    %1075 = vmatprep.subr.mxu0 %v266
    %1076 = vmatpush1.msra.mxu0 %v265
    %1077 = vmatprep.subr.mxu0 %v268
    %1078 = vmatpush1.msra.mxu0 %v267
    %1079 = vmatprep.subr.mxu0 %v270
    %1080 = vmatpush1.msra.mxu0 %v269
    %1081 = vmatprep.subr.mxu0 %v272
    %1082 = vmatpush1.msra.mxu0 %v271
    %1083 = vmatprep.subr.mxu0 %v274
    %1084 = vmatpush1.msra.mxu0 %v273
    %1085 = vmatprep.subr.mxu0 %v276
    %1086 = vmatpush1.msra.mxu0 %v275
    %1087 = vmatprep.subr.mxu0 %v278
    %1088 = vmatpush1.msra.mxu0 %v277
    %1089 = vmatprep.subr.mxu0 %v280
    %1090 = vmatpush1.msra.mxu0 %v279
    %1091 = vmatprep.subr.mxu0 %v282
    %1092 = vmatpush1.msra.mxu0 %v281
    %1093 = vmatprep.subr.mxu0 %v284
    %1094 = vmatpush1.msra.mxu0 %v283
    %1095 = vmatprep.subr.mxu0 0.0
    %1096 = vmatpush1.msra.mxu0 0.0
    %1097 = vmatprep.subr.mxu0 0.0
    %1098 = vmatpush1.msra.mxu0 0.0
    %1099 = vmatprep.subr.mxu0 0.0
    %1100 = vmatpush1.msra.mxu0 0.0
    %1101 = vmatprep.subr.mxu0 0.0
    %1102 = vmatpush1.msra.mxu0 0.0
    %1103 = vmatprep.subr.mxu0 0.0
    %1104 = vmatpush1.msra.mxu0 0.0
    %1105 = vmatprep.subr.mxu0 0.0
    %1106 = vmatpush1.msra.mxu0 0.0
    %1107 = vmatprep.subr.mxu0 0.0
    %1108 = vmatpush1.msra.mxu0 0.0
    %1109 = vmatprep.subr.mxu0 0.0
    %1110 = vmatpush1.msra.mxu0 0.0
    %1111 = vmatprep.subr.mxu0 0.0
    %1112 = vmatpush1.msra.mxu0 0.0
    %1113 = vmatprep.subr.mxu0 0.0
    %1114 = vmatpush1.msra.mxu0 0.0
    %1115 = vmatprep.subr.mxu0 0.0
    %1116 = vmatpush1.msra.mxu0 0.0
    %1117 = vmatprep.subr.mxu0 0.0
    %1118 = vmatpush1.msra.mxu0 0.0
    %1119 = vmatprep.subr.mxu0 0.0
    %1120 = vmatpush1.msra.mxu0 0.0
    %1121 = vmatprep.subr.mxu0 0.0
    %1122 = vmatpush1.msra.mxu0 0.0
    %1123 = vmatprep.subr.mxu0 0.0
    %1124 = vmatpush1.msra.mxu0 0.0
    %1125 = vmatprep.subr.mxu0 0.0
    %1126 = vmatpush1.msra.mxu0 0.0
    %1127 = vmatprep.mubr.f32.mxu0 0.0
    %1128 = vmatmul.mubr.f32.gmra.mrb[0].mxu0 %v1062
    %v1129 = vpop.f32.mrb[0].mxu0
    %v1130 = vadd.f32 %v290, %v1129
    %v1131 = vpop.f32.mrb[0].mxu0
    %v1132 = vadd.f32 %v294, %v1131
    %1133 = vdwg.mxu0
    %v1134 = vxor.u32 %v1056, 2147483648
    %v1135 = vxor.u32 %v1057, 2147483648
    %v1136 = vmul.f32 %v1134, 1.442695
    %v1137 = vpow.pop %v1136
    %v1138 = vmul.f32 %v1135, 1.442695
    %v1139 = vpow.pop %v1138
    %v1140 = vadd.f32 %v1137, 1.0
    %v1141 = vadd.f32 %v1139, 1.0
    %v1142 = vrcp.pop %v1140
    %v1143 = vmul.f32 1.0, %v1142
    %v1144 = vrcp.pop %v1141
    %v1145 = vmul.f32 1.0, %v1144
    %v1146 = vtanh.pop %v1057
    %v1147 = vmul.f32 %v1143, %v940
    %1149 = vrot.lane.b32.xlu0 %v1146, 64
    %v1150 = vpop.permute.xlu0 %1149
    %v1152 = vmul.f32 %v1143, %v1150
    %1154 = vrot.lane.b32.xlu0 %v1152, 64
    %v1155 = vpop.permute.xlu0 %1154
    %v1157 = vadd.f32 %v1147, %v1155
    %v1158 = vtanh.pop %v1157
    %1160 = vrot.lane.b32.xlu0 %v1158, 64
    %v1161 = vpop.permute.xlu0 %1160
    %v1163 = vmul.f32 %v1145, %v1161
    %v1164 = vxor.u32 %v1130, 2147483648
    %v1165 = vxor.u32 %v1132, 2147483648
    %v1166 = vmul.f32 %v1164, 1.442695
    %v1167 = vpow.pop %v1166
    %v1168 = vmul.f32 %v1165, 1.442695
    %v1169 = vpow.pop %v1168
    %v1170 = vadd.f32 %v1167, 1.0
    %v1171 = vadd.f32 %v1169, 1.0
    %v1172 = vrcp.pop %v1170
    %v1173 = vmul.f32 1.0, %v1172
    %v1174 = vrcp.pop %v1171
    %v1175 = vmul.f32 1.0, %v1174
    %v1176 = vtanh.pop %v1132
    %v1177 = vmul.f32 %v1173, %v970
    %1179 = vrot.lane.b32.xlu0 %v1176, 64
    %v1180 = vpop.permute.xlu0 %1179
    %v1182 = vmul.f32 %v1173, %v1180
    %1184 = vrot.lane.b32.xlu0 %v1182, 64
    %v1185 = vpop.permute.xlu0 %1184
    %v1187 = vadd.f32 %v1177, %v1185
    %v1188 = vtanh.pop %v1187
    %1190 = vrot.lane.b32.xlu0 %v1188, 64
    %v1191 = vpop.permute.xlu0 %1190
    %v1193 = vmul.f32 %v1175, %v1191
    %s1194 = smul.u32 5, 2
    %s1195 = smul.addr %s1194, 8
    %s1196 = scalar_lea.vmem [#allocation2], %s1195
    %v1197 = vld [vmem:[%s1196] sm:$0xff]
    %v1198 = vld [vmem:[%s1196 + $0x8] sm:$0xff]
    %v1200 = vsel %vm334, %v1163, 0
    %1202 = vmatprep.subr.mxu0 %v238
    %1203 = vmatpush1.msra.mxu0 %v237
    %1204 = vmatprep.subr.mxu0 %v240
    %1205 = vmatpush1.msra.mxu0 %v239
    %1206 = vmatprep.subr.mxu0 %v242
    %1207 = vmatpush1.msra.mxu0 %v241
    %1208 = vmatprep.subr.mxu0 %v244
    %1209 = vmatpush1.msra.mxu0 %v243
    %1210 = vmatprep.subr.mxu0 %v246
    %1211 = vmatpush1.msra.mxu0 %v245
    %1212 = vmatprep.subr.mxu0 %v248
    %1213 = vmatpush1.msra.mxu0 %v247
    %1214 = vmatprep.subr.mxu0 %v250
    %1215 = vmatpush1.msra.mxu0 %v249
    %1216 = vmatprep.subr.mxu0 %v252
    %1217 = vmatpush1.msra.mxu0 %v251
    %1218 = vmatprep.subr.mxu0 0.0
    %1219 = vmatpush1.msra.mxu0 0.0
    %1220 = vmatprep.subr.mxu0 0.0
    %1221 = vmatpush1.msra.mxu0 0.0
    %1222 = vmatprep.subr.mxu0 0.0
    %1223 = vmatpush1.msra.mxu0 0.0
    %1224 = vmatprep.subr.mxu0 0.0
    %1225 = vmatpush1.msra.mxu0 0.0
    %1226 = vmatprep.subr.mxu0 0.0
    %1227 = vmatpush1.msra.mxu0 0.0
    %1228 = vmatprep.subr.mxu0 0.0
    %1229 = vmatpush1.msra.mxu0 0.0
    %1230 = vmatprep.subr.mxu0 0.0
    %1231 = vmatpush1.msra.mxu0 0.0
    %1232 = vmatprep.subr.mxu0 0.0
    %1233 = vmatpush1.msra.mxu0 0.0
    %1234 = vmatprep.subr.mxu0 0.0
    %1235 = vmatpush1.msra.mxu0 0.0
    %1236 = vmatprep.subr.mxu0 0.0
    %1237 = vmatpush1.msra.mxu0 0.0
    %1238 = vmatprep.subr.mxu0 0.0
    %1239 = vmatpush1.msra.mxu0 0.0
    %1240 = vmatprep.subr.mxu0 0.0
    %1241 = vmatpush1.msra.mxu0 0.0
    %1242 = vmatprep.subr.mxu0 0.0
    %1243 = vmatpush1.msra.mxu0 0.0
    %1244 = vmatprep.subr.mxu0 0.0
    %1245 = vmatpush1.msra.mxu0 0.0
    %1246 = vmatprep.subr.mxu0 0.0
    %1247 = vmatpush1.msra.mxu0 0.0
    %1248 = vmatprep.subr.mxu0 0.0
    %1249 = vmatpush1.msra.mxu0 0.0
    %1250 = vmatprep.subr.mxu0 0.0
    %1251 = vmatpush1.msra.mxu0 0.0
    %1252 = vmatprep.subr.mxu0 0.0
    %1253 = vmatpush1.msra.mxu0 0.0
    %1254 = vmatprep.subr.mxu0 0.0
    %1255 = vmatpush1.msra.mxu0 0.0
    %1256 = vmatprep.subr.mxu0 0.0
    %1257 = vmatpush1.msra.mxu0 0.0
    %1258 = vmatprep.subr.mxu0 0.0
    %1259 = vmatpush1.msra.mxu0 0.0
    %1260 = vmatprep.subr.mxu0 0.0
    %1261 = vmatpush1.msra.mxu0 0.0
    %1262 = vmatprep.subr.mxu0 0.0
    %1263 = vmatpush1.msra.mxu0 0.0
    %1264 = vmatprep.subr.mxu0 0.0
    %1265 = vmatpush1.msra.mxu0 0.0
    %1266 = vmatprep.mubr.f32.mxu0 0.0
    %1267 = vmatmul.mubr.f32.gmra.mrb[0].mxu0 %v1200
    %v1268 = vpop.f32.mrb[0].mxu0
    %v1269 = vadd.f32 0.0, %v1268
    %v1270 = vpop.f32.mrb[0].mxu0
    %v1271 = vadd.f32 0.0, %v1270
    %1272 = vdwg.mxu0
    %v1273 = vadd.f32 %v1197, %v1269
    %v1274 = vadd.f32 %v1198, %v1271
    %1276 = vrot.lane.b32.xlu0 %v1193, 64
    %v1277 = vpop.permute.xlu0 %1276
    %v1279 = vsel %vm334, %v1163, %v1277
    %1280 = vmatprep.subr.mxu0 %v254
    %1281 = vmatpush1.msra.mxu0 %v253
    %1282 = vmatprep.subr.mxu0 %v256
    %1283 = vmatpush1.msra.mxu0 %v255
    %1284 = vmatprep.subr.mxu0 %v258
    %1285 = vmatpush1.msra.mxu0 %v257
    %1286 = vmatprep.subr.mxu0 %v260
    %1287 = vmatpush1.msra.mxu0 %v259
    %1288 = vmatprep.subr.mxu0 %v262
    %1289 = vmatpush1.msra.mxu0 %v261
    %1290 = vmatprep.subr.mxu0 %v264
    %1291 = vmatpush1.msra.mxu0 %v263
    %1292 = vmatprep.subr.mxu0 %v266
    %1293 = vmatpush1.msra.mxu0 %v265
    %1294 = vmatprep.subr.mxu0 %v268
    %1295 = vmatpush1.msra.mxu0 %v267
    %1296 = vmatprep.subr.mxu0 %v270
    %1297 = vmatpush1.msra.mxu0 %v269
    %1298 = vmatprep.subr.mxu0 %v272
    %1299 = vmatpush1.msra.mxu0 %v271
    %1300 = vmatprep.subr.mxu0 %v274
    %1301 = vmatpush1.msra.mxu0 %v273
    %1302 = vmatprep.subr.mxu0 %v276
    %1303 = vmatpush1.msra.mxu0 %v275
    %1304 = vmatprep.subr.mxu0 %v278
    %1305 = vmatpush1.msra.mxu0 %v277
    %1306 = vmatprep.subr.mxu0 %v280
    %1307 = vmatpush1.msra.mxu0 %v279
    %1308 = vmatprep.subr.mxu0 %v282
    %1309 = vmatpush1.msra.mxu0 %v281
    %1310 = vmatprep.subr.mxu0 %v284
    %1311 = vmatpush1.msra.mxu0 %v283
    %1312 = vmatprep.subr.mxu0 0.0
    %1313 = vmatpush1.msra.mxu0 0.0
    %1314 = vmatprep.subr.mxu0 0.0
    %1315 = vmatpush1.msra.mxu0 0.0
    %1316 = vmatprep.subr.mxu0 0.0
    %1317 = vmatpush1.msra.mxu0 0.0
    %1318 = vmatprep.subr.mxu0 0.0
    %1319 = vmatpush1.msra.mxu0 0.0
    %1320 = vmatprep.subr.mxu0 0.0
    %1321 = vmatpush1.msra.mxu0 0.0
    %1322 = vmatprep.subr.mxu0 0.0
    %1323 = vmatpush1.msra.mxu0 0.0
    %1324 = vmatprep.subr.mxu0 0.0
    %1325 = vmatpush1.msra.mxu0 0.0
    %1326 = vmatprep.subr.mxu0 0.0
    %1327 = vmatpush1.msra.mxu0 0.0
    %1328 = vmatprep.subr.mxu0 0.0
    %1329 = vmatpush1.msra.mxu0 0.0
    %1330 = vmatprep.subr.mxu0 0.0
    %1331 = vmatpush1.msra.mxu0 0.0
    %1332 = vmatprep.subr.mxu0 0.0
    %1333 = vmatpush1.msra.mxu0 0.0
    %1334 = vmatprep.subr.mxu0 0.0
    %1335 = vmatpush1.msra.mxu0 0.0
    %1336 = vmatprep.subr.mxu0 0.0
    %1337 = vmatpush1.msra.mxu0 0.0
    %1338 = vmatprep.subr.mxu0 0.0
    %1339 = vmatpush1.msra.mxu0 0.0
    %1340 = vmatprep.subr.mxu0 0.0
    %1341 = vmatpush1.msra.mxu0 0.0
    %1342 = vmatprep.subr.mxu0 0.0
    %1343 = vmatpush1.msra.mxu0 0.0
    %1344 = vmatprep.mubr.f32.mxu0 0.0
    %1345 = vmatmul.mubr.f32.gmra.mrb[0].mxu0 %v1279
    %v1346 = vpop.f32.mrb[0].mxu0
    %v1347 = vadd.f32 %v290, %v1346
    %v1348 = vpop.f32.mrb[0].mxu0
    %v1349 = vadd.f32 %v294, %v1348
    %1350 = vdwg.mxu0
    %v1351 = vxor.u32 %v1273, 2147483648
    %v1352 = vxor.u32 %v1274, 2147483648
    %v1353 = vmul.f32 %v1351, 1.442695
    %v1354 = vpow.pop %v1353
    %v1355 = vmul.f32 %v1352, 1.442695
    %v1356 = vpow.pop %v1355
    %v1357 = vadd.f32 %v1354, 1.0
    %v1358 = vadd.f32 %v1356, 1.0
    %v1359 = vrcp.pop %v1357
    %v1360 = vmul.f32 1.0, %v1359
    %v1361 = vrcp.pop %v1358
    %v1362 = vmul.f32 1.0, %v1361
    %v1363 = vtanh.pop %v1274
    %v1364 = vmul.f32 %v1360, %v1157
    %1366 = vrot.lane.b32.xlu0 %v1363, 64
    %v1367 = vpop.permute.xlu0 %1366
    %v1369 = vmul.f32 %v1360, %v1367
    %1371 = vrot.lane.b32.xlu0 %v1369, 64
    %v1372 = vpop.permute.xlu0 %1371
    %v1374 = vadd.f32 %v1364, %v1372
    %v1375 = vtanh.pop %v1374
    %1377 = vrot.lane.b32.xlu0 %v1375, 64
    %v1378 = vpop.permute.xlu0 %1377
    %v1380 = vmul.f32 %v1362, %v1378
    %v1381 = vxor.u32 %v1347, 2147483648
    %v1382 = vxor.u32 %v1349, 2147483648
    %v1383 = vmul.f32 %v1381, 1.442695
    %v1384 = vpow.pop %v1383
    %v1385 = vmul.f32 %v1382, 1.442695
    %v1386 = vpow.pop %v1385
    %v1387 = vadd.f32 %v1384, 1.0
    %v1388 = vadd.f32 %v1386, 1.0
    %v1389 = vrcp.pop %v1387
    %v1390 = vmul.f32 1.0, %v1389
    %v1391 = vrcp.pop %v1388
    %v1392 = vmul.f32 1.0, %v1391
    %v1393 = vtanh.pop %v1349
    %v1394 = vmul.f32 %v1390, %v1187
    %1396 = vrot.lane.b32.xlu0 %v1393, 64
    %v1397 = vpop.permute.xlu0 %1396
    %v1399 = vmul.f32 %v1390, %v1397
    %1401 = vrot.lane.b32.xlu0 %v1399, 64
    %v1402 = vpop.permute.xlu0 %1401
    %v1404 = vadd.f32 %v1394, %v1402
    %v1405 = vtanh.pop %v1404
    %1407 = vrot.lane.b32.xlu0 %v1405, 64
    %v1408 = vpop.permute.xlu0 %1407
    %v1410 = vmul.f32 %v1392, %v1408
    %s1411 = smul.u32 6, 2
    %s1412 = smul.addr %s1411, 8
    %s1413 = scalar_lea.vmem [#allocation2], %s1412
    %v1414 = vld [vmem:[%s1413] sm:$0xff]
    %v1415 = vld [vmem:[%s1413 + $0x8] sm:$0xff]
    %v1417 = vsel %vm334, %v1380, 0
    %1419 = vmatprep.subr.mxu0 %v238
    %1420 = vmatpush1.msra.mxu0 %v237
    %1421 = vmatprep.subr.mxu0 %v240
    %1422 = vmatpush1.msra.mxu0 %v239
    %1423 = vmatprep.subr.mxu0 %v242
    %1424 = vmatpush1.msra.mxu0 %v241
    %1425 = vmatprep.subr.mxu0 %v244
    %1426 = vmatpush1.msra.mxu0 %v243
    %1427 = vmatprep.subr.mxu0 %v246
    %1428 = vmatpush1.msra.mxu0 %v245
    %1429 = vmatprep.subr.mxu0 %v248
    %1430 = vmatpush1.msra.mxu0 %v247
    %1431 = vmatprep.subr.mxu0 %v250
    %1432 = vmatpush1.msra.mxu0 %v249
    %1433 = vmatprep.subr.mxu0 %v252
    %1434 = vmatpush1.msra.mxu0 %v251
    %1435 = vmatprep.subr.mxu0 0.0
    %1436 = vmatpush1.msra.mxu0 0.0
    %1437 = vmatprep.subr.mxu0 0.0
    %1438 = vmatpush1.msra.mxu0 0.0
    %1439 = vmatprep.subr.mxu0 0.0
    %1440 = vmatpush1.msra.mxu0 0.0
    %1441 = vmatprep.subr.mxu0 0.0
    %1442 = vmatpush1.msra.mxu0 0.0
    %1443 = vmatprep.subr.mxu0 0.0
    %1444 = vmatpush1.msra.mxu0 0.0
    %1445 = vmatprep.subr.mxu0 0.0
    %1446 = vmatpush1.msra.mxu0 0.0
    %1447 = vmatprep.subr.mxu0 0.0
    %1448 = vmatpush1.msra.mxu0 0.0
    %1449 = vmatprep.subr.mxu0 0.0
    %1450 = vmatpush1.msra.mxu0 0.0
    %1451 = vmatprep.subr.mxu0 0.0
    %1452 = vmatpush1.msra.mxu0 0.0
    %1453 = vmatprep.subr.mxu0 0.0
    %1454 = vmatpush1.msra.mxu0 0.0
    %1455 = vmatprep.subr.mxu0 0.0
    %1456 = vmatpush1.msra.mxu0 0.0
    %1457 = vmatprep.subr.mxu0 0.0
    %1458 = vmatpush1.msra.mxu0 0.0
    %1459 = vmatprep.subr.mxu0 0.0
    %1460 = vmatpush1.msra.mxu0 0.0
    %1461 = vmatprep.subr.mxu0 0.0
    %1462 = vmatpush1.msra.mxu0 0.0
    %1463 = vmatprep.subr.mxu0 0.0
    %1464 = vmatpush1.msra.mxu0 0.0
    %1465 = vmatprep.subr.mxu0 0.0
    %1466 = vmatpush1.msra.mxu0 0.0
    %1467 = vmatprep.subr.mxu0 0.0
    %1468 = vmatpush1.msra.mxu0 0.0
    %1469 = vmatprep.subr.mxu0 0.0
    %1470 = vmatpush1.msra.mxu0 0.0
    %1471 = vmatprep.subr.mxu0 0.0
    %1472 = vmatpush1.msra.mxu0 0.0
    %1473 = vmatprep.subr.mxu0 0.0
    %1474 = vmatpush1.msra.mxu0 0.0
    %1475 = vmatprep.subr.mxu0 0.0
    %1476 = vmatpush1.msra.mxu0 0.0
    %1477 = vmatprep.subr.mxu0 0.0
    %1478 = vmatpush1.msra.mxu0 0.0
    %1479 = vmatprep.subr.mxu0 0.0
    %1480 = vmatpush1.msra.mxu0 0.0
    %1481 = vmatprep.subr.mxu0 0.0
    %1482 = vmatpush1.msra.mxu0 0.0
    %1483 = vmatprep.mubr.f32.mxu0 0.0
    %1484 = vmatmul.mubr.f32.gmra.mrb[0].mxu0 %v1417
    %v1485 = vpop.f32.mrb[0].mxu0
    %v1486 = vadd.f32 0.0, %v1485
    %v1487 = vpop.f32.mrb[0].mxu0
    %v1488 = vadd.f32 0.0, %v1487
    %1489 = vdwg.mxu0
    %v1490 = vadd.f32 %v1414, %v1486
    %v1491 = vadd.f32 %v1415, %v1488
    %1493 = vrot.lane.b32.xlu0 %v1410, 64
    %v1494 = vpop.permute.xlu0 %1493
    %v1496 = vsel %vm334, %v1380, %v1494
    %1497 = vmatprep.subr.mxu0 %v254
    %1498 = vmatpush1.msra.mxu0 %v253
    %1499 = vmatprep.subr.mxu0 %v256
    %1500 = vmatpush1.msra.mxu0 %v255
    %1501 = vmatprep.subr.mxu0 %v258
    %1502 = vmatpush1.msra.mxu0 %v257
    %1503 = vmatprep.subr.mxu0 %v260
    %1504 = vmatpush1.msra.mxu0 %v259
    %1505 = vmatprep.subr.mxu0 %v262
    %1506 = vmatpush1.msra.mxu0 %v261
    %1507 = vmatprep.subr.mxu0 %v264
    %1508 = vmatpush1.msra.mxu0 %v263
    %1509 = vmatprep.subr.mxu0 %v266
    %1510 = vmatpush1.msra.mxu0 %v265
    %1511 = vmatprep.subr.mxu0 %v268
    %1512 = vmatpush1.msra.mxu0 %v267
    %1513 = vmatprep.subr.mxu0 %v270
    %1514 = vmatpush1.msra.mxu0 %v269
    %1515 = vmatprep.subr.mxu0 %v272
    %1516 = vmatpush1.msra.mxu0 %v271
    %1517 = vmatprep.subr.mxu0 %v274
    %1518 = vmatpush1.msra.mxu0 %v273
    %1519 = vmatprep.subr.mxu0 %v276
    %1520 = vmatpush1.msra.mxu0 %v275
    %1521 = vmatprep.subr.mxu0 %v278
    %1522 = vmatpush1.msra.mxu0 %v277
    %1523 = vmatprep.subr.mxu0 %v280
    %1524 = vmatpush1.msra.mxu0 %v279
    %1525 = vmatprep.subr.mxu0 %v282
    %1526 = vmatpush1.msra.mxu0 %v281
    %1527 = vmatprep.subr.mxu0 %v284
    %1528 = vmatpush1.msra.mxu0 %v283
    %1529 = vmatprep.subr.mxu0 0.0
    %1530 = vmatpush1.msra.mxu0 0.0
    %1531 = vmatprep.subr.mxu0 0.0
    %1532 = vmatpush1.msra.mxu0 0.0
    %1533 = vmatprep.subr.mxu0 0.0
    %1534 = vmatpush1.msra.mxu0 0.0
    %1535 = vmatprep.subr.mxu0 0.0
    %1536 = vmatpush1.msra.mxu0 0.0
    %1537 = vmatprep.subr.mxu0 0.0
    %1538 = vmatpush1.msra.mxu0 0.0
    %1539 = vmatprep.subr.mxu0 0.0
    %1540 = vmatpush1.msra.mxu0 0.0
    %1541 = vmatprep.subr.mxu0 0.0
    %1542 = vmatpush1.msra.mxu0 0.0
    %1543 = vmatprep.subr.mxu0 0.0
    %1544 = vmatpush1.msra.mxu0 0.0
    %1545 = vmatprep.subr.mxu0 0.0
    %1546 = vmatpush1.msra.mxu0 0.0
    %1547 = vmatprep.subr.mxu0 0.0
    %1548 = vmatpush1.msra.mxu0 0.0
    %1549 = vmatprep.subr.mxu0 0.0
    %1550 = vmatpush1.msra.mxu0 0.0
    %1551 = vmatprep.subr.mxu0 0.0
    %1552 = vmatpush1.msra.mxu0 0.0
    %1553 = vmatprep.subr.mxu0 0.0
    %1554 = vmatpush1.msra.mxu0 0.0
    %1555 = vmatprep.subr.mxu0 0.0
    %1556 = vmatpush1.msra.mxu0 0.0
    %1557 = vmatprep.subr.mxu0 0.0
    %1558 = vmatpush1.msra.mxu0 0.0
    %1559 = vmatprep.subr.mxu0 0.0
    %1560 = vmatpush1.msra.mxu0 0.0
    %1561 = vmatprep.mubr.f32.mxu0 0.0
    %1562 = vmatmul.mubr.f32.gmra.mrb[0].mxu0 %v1496
    %v1563 = vpop.f32.mrb[0].mxu0
    %v1564 = vadd.f32 %v290, %v1563
    %v1565 = vpop.f32.mrb[0].mxu0
    %v1566 = vadd.f32 %v294, %v1565
    %1567 = vdwg.mxu0
    %v1568 = vxor.u32 %v1490, 2147483648
    %v1569 = vxor.u32 %v1491, 2147483648
    %v1570 = vmul.f32 %v1568, 1.442695
    %v1571 = vpow.pop %v1570
    %v1572 = vmul.f32 %v1569, 1.442695
    %v1573 = vpow.pop %v1572
    %v1574 = vadd.f32 %v1571, 1.0
    %v1575 = vadd.f32 %v1573, 1.0
    %v1576 = vrcp.pop %v1574
    %v1577 = vmul.f32 1.0, %v1576
    %v1578 = vrcp.pop %v1575
    %v1579 = vmul.f32 1.0, %v1578
    %v1580 = vtanh.pop %v1491
    %v1581 = vmul.f32 %v1577, %v1374
    %1583 = vrot.lane.b32.xlu0 %v1580, 64
    %v1584 = vpop.permute.xlu0 %1583
    %v1586 = vmul.f32 %v1577, %v1584
    %1588 = vrot.lane.b32.xlu0 %v1586, 64
    %v1589 = vpop.permute.xlu0 %1588
    %v1591 = vadd.f32 %v1581, %v1589
    %v1592 = vtanh.pop %v1591
    %1594 = vrot.lane.b32.xlu0 %v1592, 64
    %v1595 = vpop.permute.xlu0 %1594
    %v1597 = vmul.f32 %v1579, %v1595
    %v1598 = vxor.u32 %v1564, 2147483648
    %v1599 = vxor.u32 %v1566, 2147483648
    %v1600 = vmul.f32 %v1598, 1.442695
    %v1601 = vpow.pop %v1600
    %v1602 = vmul.f32 %v1599, 1.442695
    %v1603 = vpow.pop %v1602
    %v1604 = vadd.f32 %v1601, 1.0
    %v1605 = vadd.f32 %v1603, 1.0
    %v1606 = vrcp.pop %v1604
    %v1607 = vmul.f32 1.0, %v1606
    %v1608 = vrcp.pop %v1605
    %v1609 = vmul.f32 1.0, %v1608
    %v1610 = vtanh.pop %v1566
    %v1611 = vmul.f32 %v1607, %v1404
    %1613 = vrot.lane.b32.xlu0 %v1610, 64
    %v1614 = vpop.permute.xlu0 %1613
    %v1616 = vmul.f32 %v1607, %v1614
    %1618 = vrot.lane.b32.xlu0 %v1616, 64
    %v1619 = vpop.permute.xlu0 %1618
    %v1621 = vadd.f32 %v1611, %v1619
    %v1622 = vtanh.pop %v1621
    %1624 = vrot.lane.b32.xlu0 %v1622, 64
    %v1625 = vpop.permute.xlu0 %1624
    %v1627 = vmul.f32 %v1609, %v1625
    %s1628 = smul.u32 7, 2
    %s1629 = smul.addr %s1628, 8
    %s1630 = scalar_lea.vmem [#allocation2], %s1629
    %v1631 = vld [vmem:[%s1630] sm:$0xff]
    %v1632 = vld [vmem:[%s1630 + $0x8] sm:$0xff]
    %v1634 = vsel %vm334, %v1597, 0
    %1636 = vmatprep.subr.mxu0 %v238
    %1637 = vmatpush1.msra.mxu0 %v237
    %1638 = vmatprep.subr.mxu0 %v240
    %1639 = vmatpush1.msra.mxu0 %v239
    %1640 = vmatprep.subr.mxu0 %v242
    %1641 = vmatpush1.msra.mxu0 %v241
    %1642 = vmatprep.subr.mxu0 %v244
    %1643 = vmatpush1.msra.mxu0 %v243
    %1644 = vmatprep.subr.mxu0 %v246
    %1645 = vmatpush1.msra.mxu0 %v245
    %1646 = vmatprep.subr.mxu0 %v248
    %1647 = vmatpush1.msra.mxu0 %v247
    %1648 = vmatprep.subr.mxu0 %v250
    %1649 = vmatpush1.msra.mxu0 %v249
    %1650 = vmatprep.subr.mxu0 %v252
    %1651 = vmatpush1.msra.mxu0 %v251
    %1652 = vmatprep.subr.mxu0 0.0
    %1653 = vmatpush1.msra.mxu0 0.0
    %1654 = vmatprep.subr.mxu0 0.0
    %1655 = vmatpush1.msra.mxu0 0.0
    %1656 = vmatprep.subr.mxu0 0.0
    %1657 = vmatpush1.msra.mxu0 0.0
    %1658 = vmatprep.subr.mxu0 0.0
    %1659 = vmatpush1.msra.mxu0 0.0
    %1660 = vmatprep.subr.mxu0 0.0
    %1661 = vmatpush1.msra.mxu0 0.0
    %1662 = vmatprep.subr.mxu0 0.0
    %1663 = vmatpush1.msra.mxu0 0.0
    %1664 = vmatprep.subr.mxu0 0.0
    %1665 = vmatpush1.msra.mxu0 0.0
    %1666 = vmatprep.subr.mxu0 0.0
    %1667 = vmatpush1.msra.mxu0 0.0
    %1668 = vmatprep.subr.mxu0 0.0
    %1669 = vmatpush1.msra.mxu0 0.0
    %1670 = vmatprep.subr.mxu0 0.0
    %1671 = vmatpush1.msra.mxu0 0.0
    %1672 = vmatprep.subr.mxu0 0.0
    %1673 = vmatpush1.msra.mxu0 0.0
    %1674 = vmatprep.subr.mxu0 0.0
    %1675 = vmatpush1.msra.mxu0 0.0
    %1676 = vmatprep.subr.mxu0 0.0
    %1677 = vmatpush1.msra.mxu0 0.0
    %1678 = vmatprep.subr.mxu0 0.0
    %1679 = vmatpush1.msra.mxu0 0.0
    %1680 = vmatprep.subr.mxu0 0.0
    %1681 = vmatpush1.msra.mxu0 0.0
    %1682 = vmatprep.subr.mxu0 0.0
    %1683 = vmatpush1.msra.mxu0 0.0
    %1684 = vmatprep.subr.mxu0 0.0
    %1685 = vmatpush1.msra.mxu0 0.0
    %1686 = vmatprep.subr.mxu0 0.0
    %1687 = vmatpush1.msra.mxu0 0.0
    %1688 = vmatprep.subr.mxu0 0.0
    %1689 = vmatpush1.msra.mxu0 0.0
    %1690 = vmatprep.subr.mxu0 0.0
    %1691 = vmatpush1.msra.mxu0 0.0
    %1692 = vmatprep.subr.mxu0 0.0
    %1693 = vmatpush1.msra.mxu0 0.0
    %1694 = vmatprep.subr.mxu0 0.0
    %1695 = vmatpush1.msra.mxu0 0.0
    %1696 = vmatprep.subr.mxu0 0.0
    %1697 = vmatpush1.msra.mxu0 0.0
    %1698 = vmatprep.subr.mxu0 0.0
    %1699 = vmatpush1.msra.mxu0 0.0
    %1700 = vmatprep.mubr.f32.mxu0 0.0
    %1701 = vmatmul.mubr.f32.gmra.mrb[0].mxu0 %v1634
    %v1702 = vpop.f32.mrb[0].mxu0
    %v1703 = vadd.f32 0.0, %v1702
    %v1704 = vpop.f32.mrb[0].mxu0
    %v1705 = vadd.f32 0.0, %v1704
    %1706 = vdwg.mxu0
    %v1707 = vadd.f32 %v1631, %v1703
    %v1708 = vadd.f32 %v1632, %v1705
    %1710 = vrot.lane.b32.xlu0 %v1627, 64
    %v1711 = vpop.permute.xlu0 %1710
    %v1713 = vsel %vm334, %v1597, %v1711
    %1714 = vmatprep.subr.mxu0 %v254
    %1715 = vmatpush1.msra.mxu0 %v253
    %1716 = vmatprep.subr.mxu0 %v256
    %1717 = vmatpush1.msra.mxu0 %v255
    %1718 = vmatprep.subr.mxu0 %v258
    %1719 = vmatpush1.msra.mxu0 %v257
    %1720 = vmatprep.subr.mxu0 %v260
    %1721 = vmatpush1.msra.mxu0 %v259
    %1722 = vmatprep.subr.mxu0 %v262
    %1723 = vmatpush1.msra.mxu0 %v261
    %1724 = vmatprep.subr.mxu0 %v264
    %1725 = vmatpush1.msra.mxu0 %v263
    %1726 = vmatprep.subr.mxu0 %v266
    %1727 = vmatpush1.msra.mxu0 %v265
    %1728 = vmatprep.subr.mxu0 %v268
    %1729 = vmatpush1.msra.mxu0 %v267
    %1730 = vmatprep.subr.mxu0 %v270
    %1731 = vmatpush1.msra.mxu0 %v269
    %1732 = vmatprep.subr.mxu0 %v272
    %1733 = vmatpush1.msra.mxu0 %v271
    %1734 = vmatprep.subr.mxu0 %v274
    %1735 = vmatpush1.msra.mxu0 %v273
    %1736 = vmatprep.subr.mxu0 %v276
    %1737 = vmatpush1.msra.mxu0 %v275
    %1738 = vmatprep.subr.mxu0 %v278
    %1739 = vmatpush1.msra.mxu0 %v277
    %1740 = vmatprep.subr.mxu0 %v280
    %1741 = vmatpush1.msra.mxu0 %v279
    %1742 = vmatprep.subr.mxu0 %v282
    %1743 = vmatpush1.msra.mxu0 %v281
    %1744 = vmatprep.subr.mxu0 %v284
    %1745 = vmatpush1.msra.mxu0 %v283
    %1746 = vmatprep.subr.mxu0 0.0
    %1747 = vmatpush1.msra.mxu0 0.0
    %1748 = vmatprep.subr.mxu0 0.0
    %1749 = vmatpush1.msra.mxu0 0.0
    %1750 = vmatprep.subr.mxu0 0.0
    %1751 = vmatpush1.msra.mxu0 0.0
    %1752 = vmatprep.subr.mxu0 0.0
    %1753 = vmatpush1.msra.mxu0 0.0
    %1754 = vmatprep.subr.mxu0 0.0
    %1755 = vmatpush1.msra.mxu0 0.0
    %1756 = vmatprep.subr.mxu0 0.0
    %1757 = vmatpush1.msra.mxu0 0.0
    %1758 = vmatprep.subr.mxu0 0.0
    %1759 = vmatpush1.msra.mxu0 0.0
    %1760 = vmatprep.subr.mxu0 0.0
    %1761 = vmatpush1.msra.mxu0 0.0
    %1762 = vmatprep.subr.mxu0 0.0
    %1763 = vmatpush1.msra.mxu0 0.0
    %1764 = vmatprep.subr.mxu0 0.0
    %1765 = vmatpush1.msra.mxu0 0.0
    %1766 = vmatprep.subr.mxu0 0.0
    %1767 = vmatpush1.msra.mxu0 0.0
    %1768 = vmatprep.subr.mxu0 0.0
    %1769 = vmatpush1.msra.mxu0 0.0
    %1770 = vmatprep.subr.mxu0 0.0
    %1771 = vmatpush1.msra.mxu0 0.0
    %1772 = vmatprep.subr.mxu0 0.0
    %1773 = vmatpush1.msra.mxu0 0.0
    %1774 = vmatprep.subr.mxu0 0.0
    %1775 = vmatpush1.msra.mxu0 0.0
    %1776 = vmatprep.subr.mxu0 0.0
    %1777 = vmatpush1.msra.mxu0 0.0
    %1778 = vmatprep.mubr.f32.mxu0 0.0
    %1779 = vmatmul.mubr.f32.gmra.mrb[0].mxu0 %v1713
    %v1780 = vpop.f32.mrb[0].mxu0
    %v1781 = vadd.f32 %v290, %v1780
    %v1782 = vpop.f32.mrb[0].mxu0
    %v1783 = vadd.f32 %v294, %v1782
    %1784 = vdwg.mxu0
    %v1785 = vxor.u32 %v1707, 2147483648
    %v1786 = vxor.u32 %v1708, 2147483648
    %v1787 = vmul.f32 %v1785, 1.442695
    %v1788 = vpow.pop %v1787
    %v1789 = vmul.f32 %v1786, 1.442695
    %v1790 = vpow.pop %v1789
    %v1791 = vadd.f32 %v1788, 1.0
    %v1792 = vadd.f32 %v1790, 1.0
    %v1793 = vrcp.pop %v1791
    %v1794 = vmul.f32 1.0, %v1793
    %v1795 = vrcp.pop %v1792
    %v1796 = vmul.f32 1.0, %v1795
    %v1797 = vtanh.pop %v1708
    %v1798 = vmul.f32 %v1794, %v1591
    %1800 = vrot.lane.b32.xlu0 %v1797, 64
    %v1801 = vpop.permute.xlu0 %1800
    %v1803 = vmul.f32 %v1794, %v1801
    %1805 = vrot.lane.b32.xlu0 %v1803, 64
    %v1806 = vpop.permute.xlu0 %1805
    %v1808 = vadd.f32 %v1798, %v1806
    %v1809 = vtanh.pop %v1808
    %1811 = vrot.lane.b32.xlu0 %v1809, 64
    %v1812 = vpop.permute.xlu0 %1811
    %v1814 = vmul.f32 %v1796, %v1812
    %v1815 = vxor.u32 %v1781, 2147483648
    %v1816 = vxor.u32 %v1783, 2147483648
    %v1817 = vmul.f32 %v1815, 1.442695
    %v1818 = vpow.pop %v1817
    %v1819 = vmul.f32 %v1816, 1.442695
    %v1820 = vpow.pop %v1819
    %v1821 = vadd.f32 %v1818, 1.0
    %v1822 = vadd.f32 %v1820, 1.0
    %v1823 = vrcp.pop %v1821
    %v1824 = vmul.f32 1.0, %v1823
    %v1825 = vrcp.pop %v1822
    %v1826 = vmul.f32 1.0, %v1825
    %v1827 = vtanh.pop %v1783
    %v1828 = vmul.f32 %v1824, %v1621
    %1830 = vrot.lane.b32.xlu0 %v1827, 64
    %v1831 = vpop.permute.xlu0 %1830
    %v1833 = vmul.f32 %v1824, %v1831
    %1835 = vrot.lane.b32.xlu0 %v1833, 64
    %v1836 = vpop.permute.xlu0 %1835
    %v1838 = vadd.f32 %v1828, %v1836
    %v1839 = vtanh.pop %v1838
    %1841 = vrot.lane.b32.xlu0 %v1839, 64
    %v1842 = vpop.permute.xlu0 %1841
    %v1844 = vmul.f32 %v1826, %v1842
    %1846 = vrot.lane.b32.xlu0 %v1844, 64
    %v1847 = vpop.permute.xlu0 %1846
    %v1849 = vsel %vm334, %v1814, %v1847
    %1850 = vmatprep.subr.mxu0 %v254
    %1851 = vmatpush1.msra.mxu0 %v253
    %1852 = vmatprep.subr.mxu0 %v256
    %1853 = vmatpush1.msra.mxu0 %v255
    %1854 = vmatprep.subr.mxu0 %v258
    %1855 = vmatpush1.msra.mxu0 %v257
    %1856 = vmatprep.subr.mxu0 %v260
    %1857 = vmatpush1.msra.mxu0 %v259
    %1858 = vmatprep.subr.mxu0 %v262
    %1859 = vmatpush1.msra.mxu0 %v261
    %1860 = vmatprep.subr.mxu0 %v264
    %1861 = vmatpush1.msra.mxu0 %v263
    %1862 = vmatprep.subr.mxu0 %v266
    %1863 = vmatpush1.msra.mxu0 %v265
    %1864 = vmatprep.subr.mxu0 %v268
    %1865 = vmatpush1.msra.mxu0 %v267
    %1866 = vmatprep.subr.mxu0 %v270
    %1867 = vmatpush1.msra.mxu0 %v269
    %1868 = vmatprep.subr.mxu0 %v272
    %1869 = vmatpush1.msra.mxu0 %v271
    %1870 = vmatprep.subr.mxu0 %v274
    %1871 = vmatpush1.msra.mxu0 %v273
    %1872 = vmatprep.subr.mxu0 %v276
    %1873 = vmatpush1.msra.mxu0 %v275
    %1874 = vmatprep.subr.mxu0 %v278
    %1875 = vmatpush1.msra.mxu0 %v277
    %1876 = vmatprep.subr.mxu0 %v280
    %1877 = vmatpush1.msra.mxu0 %v279
    %1878 = vmatprep.subr.mxu0 %v282
    %1879 = vmatpush1.msra.mxu0 %v281
    %1880 = vmatprep.subr.mxu0 %v284
    %1881 = vmatpush1.msra.mxu0 %v283
    %1882 = vmatprep.subr.mxu0 0.0
    %1883 = vmatpush1.msra.mxu0 0.0
    %1884 = vmatprep.subr.mxu0 0.0
    %1885 = vmatpush1.msra.mxu0 0.0
    %1886 = vmatprep.subr.mxu0 0.0
    %1887 = vmatpush1.msra.mxu0 0.0
    %1888 = vmatprep.subr.mxu0 0.0
    %1889 = vmatpush1.msra.mxu0 0.0
    %1890 = vmatprep.subr.mxu0 0.0
    %1891 = vmatpush1.msra.mxu0 0.0
    %1892 = vmatprep.subr.mxu0 0.0
    %1893 = vmatpush1.msra.mxu0 0.0
    %1894 = vmatprep.subr.mxu0 0.0
    %1895 = vmatpush1.msra.mxu0 0.0
    %1896 = vmatprep.subr.mxu0 0.0
    %1897 = vmatpush1.msra.mxu0 0.0
    %1898 = vmatprep.subr.mxu0 0.0
    %1899 = vmatpush1.msra.mxu0 0.0
    %1900 = vmatprep.subr.mxu0 0.0
    %1901 = vmatpush1.msra.mxu0 0.0
    %1902 = vmatprep.subr.mxu0 0.0
    %1903 = vmatpush1.msra.mxu0 0.0
    %1904 = vmatprep.subr.mxu0 0.0
    %1905 = vmatpush1.msra.mxu0 0.0
    %1906 = vmatprep.subr.mxu0 0.0
    %1907 = vmatpush1.msra.mxu0 0.0
    %1908 = vmatprep.subr.mxu0 0.0
    %1909 = vmatpush1.msra.mxu0 0.0
    %1910 = vmatprep.subr.mxu0 0.0
    %1911 = vmatpush1.msra.mxu0 0.0
    %1912 = vmatprep.subr.mxu0 0.0
    %1913 = vmatpush1.msra.mxu0 0.0
    %1914 = vmatprep.mubr.f32.mxu0 0.0
    %1915 = vmatmul.mubr.f32.gmra.mrb[0].mxu0 %v1849
    %v1916 = vpop.f32.mrb[0].mxu0
    %v1917 = vadd.f32 %v290, %v1916
    %v1918 = vpop.f32.mrb[0].mxu0
    %v1919 = vadd.f32 %v294, %v1918
    %1920 = vdwg.mxu0
    %v1921 = vxor.u32 %v1917, 2147483648
    %v1922 = vxor.u32 %v1919, 2147483648
    %v1923 = vmul.f32 %v1921, 1.442695
    %v1924 = vpow.pop %v1923
    %v1925 = vmul.f32 %v1922, 1.442695
    %v1926 = vpow.pop %v1925
    %v1927 = vadd.f32 %v1924, 1.0
    %v1928 = vadd.f32 %v1926, 1.0
    %v1929 = vrcp.pop %v1927
    %v1930 = vmul.f32 1.0, %v1929
    %v1931 = vrcp.pop %v1928
    %v1932 = vmul.f32 1.0, %v1931
    %v1933 = vtanh.pop %v1919
    %v1934 = vmul.f32 %v1930, %v1838
    %1936 = vrot.lane.b32.xlu0 %v1933, 64
    %v1937 = vpop.permute.xlu0 %1936
    %v1939 = vmul.f32 %v1930, %v1937
    %1941 = vrot.lane.b32.xlu0 %v1939, 64
    %v1942 = vpop.permute.xlu0 %1941
    %v1944 = vadd.f32 %v1934, %v1942
    %v1945 = vtanh.pop %v1944
    %1947 = vrot.lane.b32.xlu0 %v1945, 64
    %v1948 = vpop.permute.xlu0 %1947
    %v1950 = vmul.f32 %v1932, %v1948
    %v1951 = vld [vmem:[%s6] sm:$0xff]
    %v1952 = vld [vmem:[%s6 + $0x8] sm:$0xff]
    %v1953 = vld [vmem:[%s6 + $0x10] sm:$0xff]
    %v1954 = vld [vmem:[%s6 + $0x18] sm:$0xff]
    %v1955 = vld [vmem:[%s6 + $0x20] sm:$0xff]
    %v1956 = vld [vmem:[%s6 + $0x28] sm:$0xff]
    %v1957 = vld [vmem:[%s6 + $0x30] sm:$0xff]
    %v1958 = vld [vmem:[%s6 + $0x38] sm:$0xff]
    %v1959 = vld [vmem:[#allocation3] sm:$0x1]
    %v1961 = vlaneseq
    %v1962 = vshrl.u32 %v1961, 7
    %v1963 = vsub.s32 0, %v1962
    %v1964 = vrot.slane %v1959, %v1963
    %v1967 = vsel %vm334, %v1950, 0
    %1969 = vmatprep.subr.mxu0 0.0
    %1970 = vmatpush1.msra.mxu0 %v1951
    %1971 = vmatprep.subr.mxu0 0.0
    %1972 = vmatpush1.msra.mxu0 %v1952
    %1973 = vmatprep.subr.mxu0 0.0
    %1974 = vmatpush1.msra.mxu0 %v1953
    %1975 = vmatprep.subr.mxu0 0.0
    %1976 = vmatpush1.msra.mxu0 %v1954
    %1977 = vmatprep.subr.mxu0 0.0
    %1978 = vmatpush1.msra.mxu0 %v1955
    %1979 = vmatprep.subr.mxu0 0.0
    %1980 = vmatpush1.msra.mxu0 %v1956
    %1981 = vmatprep.subr.mxu0 0.0
    %1982 = vmatpush1.msra.mxu0 %v1957
    %1983 = vmatprep.subr.mxu0 0.0
    %1984 = vmatpush1.msra.mxu0 %v1958
    %1985 = vmatprep.subr.mxu0 0.0
    %1986 = vmatpush1.msra.mxu0 0.0
    %1987 = vmatprep.subr.mxu0 0.0
    %1988 = vmatpush1.msra.mxu0 0.0
    %1989 = vmatprep.subr.mxu0 0.0
    %1990 = vmatpush1.msra.mxu0 0.0
    %1991 = vmatprep.subr.mxu0 0.0
    %1992 = vmatpush1.msra.mxu0 0.0
    %1993 = vmatprep.subr.mxu0 0.0
    %1994 = vmatpush1.msra.mxu0 0.0
    %1995 = vmatprep.subr.mxu0 0.0
    %1996 = vmatpush1.msra.mxu0 0.0
    %1997 = vmatprep.subr.mxu0 0.0
    %1998 = vmatpush1.msra.mxu0 0.0
    %1999 = vmatprep.subr.mxu0 0.0
    %2000 = vmatpush1.msra.mxu0 0.0
    %2001 = vmatprep.subr.mxu0 0.0
    %2002 = vmatpush1.msra.mxu0 0.0
    %2003 = vmatprep.subr.mxu0 0.0
    %2004 = vmatpush1.msra.mxu0 0.0
    %2005 = vmatprep.subr.mxu0 0.0
    %2006 = vmatpush1.msra.mxu0 0.0
    %2007 = vmatprep.subr.mxu0 0.0
    %2008 = vmatpush1.msra.mxu0 0.0
    %2009 = vmatprep.subr.mxu0 0.0
    %2010 = vmatpush1.msra.mxu0 0.0
    %2011 = vmatprep.subr.mxu0 0.0
    %2012 = vmatpush1.msra.mxu0 0.0
    %2013 = vmatprep.subr.mxu0 0.0
    %2014 = vmatpush1.msra.mxu0 0.0
    %2015 = vmatprep.subr.mxu0 0.0
    %2016 = vmatpush1.msra.mxu0 0.0
    %2017 = vmatprep.subr.mxu0 0.0
    %2018 = vmatpush1.msra.mxu0 0.0
    %2019 = vmatprep.subr.mxu0 0.0
    %2020 = vmatpush1.msra.mxu0 0.0
    %2021 = vmatprep.subr.mxu0 0.0
    %2022 = vmatpush1.msra.mxu0 0.0
    %2023 = vmatprep.subr.mxu0 0.0
    %2024 = vmatpush1.msra.mxu0 0.0
    %2025 = vmatprep.subr.mxu0 0.0
    %2026 = vmatpush1.msra.mxu0 0.0
    %2027 = vmatprep.subr.mxu0 0.0
    %2028 = vmatpush1.msra.mxu0 0.0
    %2029 = vmatprep.subr.mxu0 0.0
    %2030 = vmatpush1.msra.mxu0 0.0
    %2031 = vmatprep.subr.mxu0 0.0
    %2032 = vmatpush1.msra.mxu0 0.0
    %2033 = vmatprep.mubr.f32.mxu0 0.0
    %2034 = vmatmul.mubr.f32.gmra.mrb[0].mxu0 %v1967
    %v2035 = vpop.f32.mrb[0].mxu0
    %v2036 = vadd.f32 %v1964, %v2035
    %v2037 = vpop.f32.mrb[0].mxu0
    %2038 = vdwg.mxu0
    %vm2039 = vcmask 7168
    %2040 = vst.msk [vmem:[%s8] sm:$0xff] %vm2039, %v2036
    // Predicated region
    $region42: #{tpu_custom_call.1} parent=1 // pred_check
      _
    $region43: #{tpu_custom_call.1} parent=1 // pred_check_branch
      %2042 = sbr.rel (0) target = $region45
    $region44: #{tpu_custom_call.1} parent=1 // pred_region
      _
    $region45: #{tpu_custom_call.1} parent=1 // pred_fallthru
      _
    // Predicated region
    $region46: #{tpu_custom_call.1} parent=1 // pred_check
      _
    $region47: #{tpu_custom_call.1} parent=1 // pred_check_branch
      %2044 = sbr.rel (0) target = $region49
    $region48: #{tpu_custom_call.1} parent=1 // pred_region
      _
    $region49: #{tpu_custom_call.1} parent=1 // pred_fallthru
      _
    %2045 = vsyncpa [#allocation5], 1
    %2046 = vsyncpa [#allocation7], 1

</llo_original>
